<compile_context>
chip_gen: v7x
topology: tpu7x:2x2x1
jax: 0.10.0
libtpu: 0.0.40
codegen_flags: <defaults>
</compile_context>

<pallas_src>
import functools
import math

import jax
import jax.numpy as jnp
from jax.experimental import pallas as pl
from jax.experimental.pallas import tpu as pltpu


# ----------------------------------------------------------------------------
# Fused kernel: the whole residual conv stack for one image per grid step.
# ----------------------------------------------------------------------------
def _make_fused_kernel(L, K, H, W, C, p):
    WC = W * C

    def kernel(x_ref, w_ref, b_ref, o_ref, act_ref, res_ref):
        # x_ref:   (1, Hp, WC) f32    spatially + channel padded, (W,C)-packed
        # w_ref:   (L, K*WC, WC) bf16 folded per-layer weights (horizontal taps
        #                              and 'same' zero padding along W baked in)
        # b_ref:   (L, 1, WC)  f32    packed per-layer biases
        # o_ref:   (1, H, WC)  f32    final activation (interior rows)
        # act_ref: (Hp, WC)    f32    scratch; rows [p, p+H) hold the live
        #                              activation, halo rows stay zero
        # res_ref: (H, WC)     f32    scratch holding the residual activation
        act_ref[...] = x_ref[0]
        for l in range(L):                       # unrolled: L is static
            # K vertical taps -> one long-contraction matmul per layer.
            patch = jnp.concatenate(
                [act_ref[dy:dy + H, :] for dy in range(K)], axis=1)  # (H, K*WC)
            acc = jnp.dot(patch.astype(jnp.bfloat16), w_ref[l],
                          preferred_element_type=jnp.float32)        # (H, WC)
            acc = acc + b_ref[l]
            if l % 4 == 2:
                acc = acc + res_ref[...]         # residual add (pre-ReLU)
            y = jnp.maximum(acc, 0.0)            # ReLU, f32
            if l % 4 == 0:
                res_ref[...] = y                 # torch's x.clone()
            if l == L - 1:
                o_ref[0] = y
            else:
                act_ref[p:p + H, :] = y          # interior store; halo stays 0

    return kernel


# ----------------------------------------------------------------------------
# Parameter glue (runs once, outside the jitted forward).
# ----------------------------------------------------------------------------
def _fold_conv_weight(w, W, Cpad):
    """(K, K, Cin, Cout) 'same' conv weight -> (K*W*Cpad, W*Cpad) matrix.

    Row index order is (dy, wi, ci) (dy-major), column index is (wo, co).
    The K horizontal taps and the zero padding along W are folded into the
    matrix, so the kernel only needs K vertical (sublane) shifts of the
    lane-packed activation.
    """
    K, _, Cin, Cout = w.shape
    p = K // 2
    wp = jnp.pad(w, ((0, 0), (0, 0), (0, Cpad - Cin), (0, Cpad - Cout)))
    wi = jnp.arange(W)
    wo = jnp.arange(W)
    kw = jnp.arange(K)
    # sel[kw, wi, wo] = 1  iff  wi == wo + kw - p   (out-of-range == zero pad)
    sel = (wi[None, :, None] == wo[None, None, :] + kw[:, None, None] - p)
    folded = jnp.einsum('kio,dkcq->dicoq', sel.astype(wp.dtype), wp)
    return folded.reshape(K * W * Cpad, W * Cpad)


def prepare_params(params, W, Cpad):
    """Fold/pack all layers once: bf16 weights (L,K*W*C,W*C), f32 biases (L,1,W*C)."""
    K = params[0][0].shape[0]
    assert K % 2 == 1, "odd kernel size assumed for 'same' padding"
    w_all, b_all = [], []
    for (w, b) in params:
        assert w.shape[0] == K and w.shape[1] == K, "uniform kernel size assumed"
        w_all.append(_fold_conv_weight(w, W, Cpad))
        b_pad = jnp.pad(b, (0, Cpad - b.shape[0]))
        b_all.append(jnp.tile(b_pad, W)[None, :])            # (1, W*Cpad)
    w_all = jnp.stack(w_all).astype(jnp.bfloat16)            # (L, K*W*C, W*C)
    b_all = jnp.stack(b_all).astype(jnp.float32)             # (L, 1, W*C)
    return w_all, b_all


# ----------------------------------------------------------------------------
# Forward pass (jitted): layout plumbing + one fused pallas_call.
# ----------------------------------------------------------------------------
def residual_conv_forward(x_nchw, w_all, b_all, *, kernel_size, out_channels):
    N, Cin, H, W = x_nchw.shape
    L = w_all.shape[0]
    WC = w_all.shape[2]
    C = WC // W                       # lane-packed (padded) channel count
    assert W * C == WC and w_all.shape[1] == kernel_size * WC
    K = kernel_size
    p = K // 2
    Hp = ((H + 2 * p + 7) // 8) * 8   # padded height, rounded to sublane multiple

    # NCHW -> NHWC, zero-pad H (halo for vertical taps) and channels, then pack
    # (W, C) onto the lane axis -> lane-dense (N, Hp, W*C).
    x = jnp.transpose(x_nchw, (0, 2, 3, 1)).astype(jnp.float32)
    x = jnp.pad(x, ((0, 0), (p, Hp - H - p), (0, 0), (0, C - Cin)))
    x_packed = x.reshape(N, Hp, WC)

    kernel = _make_fused_kernel(L, K, H, W, C, p)
    out = pl.pallas_call(
        kernel,
        out_shape=jax.ShapeDtypeStruct((N, H, WC), jnp.float32),
        grid_spec=pltpu.PrefetchScalarGridSpec(
            num_scalar_prefetch=0,
            grid=(N,),
            in_specs=[
                pl.BlockSpec((1, Hp, WC), lambda n: (n, 0, 0)),
                # weights / biases: constant block index -> fetched once,
                # resident in VMEM across the whole grid.
                pl.BlockSpec(w_all.shape, lambda n: (0, 0, 0)),
                pl.BlockSpec(b_all.shape, lambda n: (0, 0, 0)),
            ],
            out_specs=pl.BlockSpec((1, H, WC), lambda n: (n, 0, 0)),
            scratch_shapes=[
                pltpu.VMEM((Hp, WC), jnp.float32),   # live activation (padded)
                pltpu.VMEM((H, WC), jnp.float32),    # residual
            ],
        ),
        compiler_params=pltpu.CompilerParams(
            dimension_semantics=("parallel",),       # v7x: one image per core
        ),
    )(x_packed, w_all, b_all)

    # Unpack lanes, drop channel padding, flatten in NCHW order to match
    # torch.nn.Flatten(start_dim=1) on an NCHW tensor.
    out = out.reshape(N, H, W, C)[:, :, :, :out_channels]
    return jnp.transpose(out, (0, 3, 1, 2)).reshape(N, -1)


# ----------------------------------------------------------------------------
# Parameter construction mirroring the PyTorch __init__ (default Conv2d init).
# ----------------------------------------------------------------------------
def build_params(key, n_input_maps, n_residual_blocks, channel_sizes, kernels,
                 strides):
    io, ks, ss = [], [], []
    for _ in range(n_residual_blocks):
        io += channel_sizes
        ks += kernels
        ss += strides
    io = [n_input_maps] + io

    params = []
    for i, o, k, s in zip(io[:-1], io[1:], ks, ss):
        assert s == 1, "padding='same' in torch.nn.Conv2d requires stride 1"
        key, kw_, kb_ = jax.random.split(key, 3)
        fan_in = i * k * k
        bound = 1.0 / math.sqrt(fan_in)       # torch Conv2d default init range
        w = jax.random.uniform(kw_, (k, k, i, o), jnp.float32, -bound, bound)
        b = jax.random.uniform(kb_, (o,), jnp.float32, -bound, bound)
        params.append((w, b))
    return params


# ----------------------------------------------------------------------------
# Pure-JAX references for the in-script correctness checks.
# ----------------------------------------------------------------------------
def _ref_forward(x_nchw, params, matmul_dtype=jnp.float32):
    x = jnp.transpose(x_nchw, (0, 2, 3, 1)).astype(jnp.float32)
    res = None
    for idx, (w, b) in enumerate(params):
        y = jax.lax.conv_general_dilated(
            x.astype(matmul_dtype), w.astype(matmul_dtype),
            window_strides=(1, 1), padding='SAME',
            dimension_numbers=('NHWC', 'HWIO', 'NHWC'),
            preferred_element_type=jnp.float32)
        y = y + b
        if idx % 4 == 2:
            y = y + res
        x = jnp.maximum(y, 0.0)
        if idx % 4 == 0:
            res = x
    xo = jnp.transpose(x, (0, 3, 1, 2))
    return xo.reshape(xo.shape[0], -1)


if __name__ == "__main__":
    key = jax.random.PRNGKey(0)
    kx, kp = jax.random.split(key)

    # ResidualConvolutionalNetwork(n_input_maps=4, n_residual_blocks=2,
    #                              channel_sizes=[8,8,8,8], kernels=[3]*4,
    #                              strides=[1]*4)
    N, Cin, H, W = 2, 4, 16, 16
    channel_sizes = [8, 8, 8, 8]
    kernels = [3, 3, 3, 3]
    strides = [1, 1, 1, 1]
    n_blocks = 2

    x = jax.random.normal(kx, (N, Cin, H, W), jnp.float32)
    params = build_params(kp, Cin, n_blocks, channel_sizes, kernels, strides)

    Cmax = max([Cin] + channel_sizes)
    out_channels = channel_sizes[-1]
    K = kernels[0]

    # Fold/pack the weights ONCE, outside the jitted forward.
    w_all, b_all = prepare_params(params, W=W, Cpad=Cmax)

    fwd = jax.jit(functools.partial(
        residual_conv_forward, w_all=w_all, b_all=b_all,
        kernel_size=K, out_channels=out_channels))
    out = jax.block_until_ready(fwd(x))
    assert out.shape == (N, out_channels * H * W), out.shape

    # Tight check vs. a reference mirroring the kernel's mixed precision
    # (bf16 MXU operands, f32 accumulation / bias / residual / ReLU).
    ref_mixed = _ref_forward(x, params, matmul_dtype=jnp.bfloat16)
    err_mixed = float(jnp.max(jnp.abs(out - ref_mixed)))
    assert jnp.allclose(out, ref_mixed, atol=5e-3, rtol=5e-3), err_mixed

    # Sanity check vs. the full-f32 torch semantics (loose tolerance because of
    # the bf16 matmul operands, as anticipated in the perf review).
    ref_f32 = _ref_forward(x, params, matmul_dtype=jnp.float32)
    err_f32 = float(jnp.max(jnp.abs(out - ref_f32)))
    assert jnp.allclose(out, ref_f32, atol=1e-1, rtol=1e-1), err_f32

    # TODO(synk): the dead matplotlib-debug string inside the torch forward()
    # has no runtime effect and is intentionally not reproduced.
    print("KERNEL_OK")
</pallas_src>

<mosaic_0001>
module attributes {stable_mosaic.version = 11 : i64} {
  func.func @kernel(%arg0: i32, %arg1: memref<1x24x128xf32, #tpu.memory_space<vmem>>, %arg2: memref<8x384x128xbf16, #tpu.memory_space<vmem>>, %arg3: memref<8x1x128xf32, #tpu.memory_space<vmem>>, %arg4: memref<1x16x128xf32, #tpu.memory_space<vmem>>, %arg5: memref<24x128xf32, #tpu.memory_space<vmem>>, %arg6: memref<16x128xf32, #tpu.memory_space<vmem>>) attributes {dimension_semantics = [#tpu.dimension_semantics<parallel>], iteration_bounds = array<i64: 2>, scalar_prefetch = 0 : i64, scratch_operands = 2 : i64, tpu.core_type = #tpu.core_type<tc>, window_params = [{transform_indices = @transform_0, window_bounds = array<i64: 1, 24, 128>}, {pipeline_mode = #tpu.pipeline_mode<synchronous>, transform_indices = @transform_1, window_bounds = array<i64: 8, 384, 128>}, {pipeline_mode = #tpu.pipeline_mode<synchronous>, transform_indices = @transform_2, window_bounds = array<i64: 8, 1, 128>}, {transform_indices = @transform_3, window_bounds = array<i64: 1, 16, 128>}]} {
    %c0 = arith.constant 0 : index
    %c0_0 = arith.constant 0 : index
    %c0_1 = arith.constant 0 : index
    %0 = vector.load %arg1[%c0, %c0_0, %c0_1] : memref<1x24x128xf32, #tpu.memory_space<vmem>>, vector<1x24x128xf32>
    %1 = vector.shape_cast %0 : vector<1x24x128xf32> to vector<24x128xf32>
    %c0_2 = arith.constant 0 : index
    %c0_3 = arith.constant 0 : index
    %2 = vector.load %arg5[%c0_2, %c0_3] : memref<24x128xf32, #tpu.memory_space<vmem>>, vector<24x128xf32>
    tpu.vector_store %arg5[%c0_2, %c0_3], %1 {strides = array<i32>} : memref<24x128xf32, #tpu.memory_space<vmem>>, vector<24x128xf32>,
    %c0_4 = arith.constant 0 : index
    %c0_5 = arith.constant 0 : index
    %3 = vector.load %arg5[%c0_4, %c0_5] : memref<24x128xf32, #tpu.memory_space<vmem>>, vector<16x128xf32>
    %c1 = arith.constant 1 : index
    %c0_6 = arith.constant 0 : index
    %4 = vector.load %arg5[%c1, %c0_6] : memref<24x128xf32, #tpu.memory_space<vmem>>, vector<16x128xf32>
    %c2 = arith.constant 2 : index
    %c0_7 = arith.constant 0 : index
    %5 = vector.load %arg5[%c2, %c0_7] : memref<24x128xf32, #tpu.memory_space<vmem>>, vector<16x128xf32>
    %6 = tpu.concatenate %3, %4, %5 in 1 : vector<16x128xf32>, vector<16x128xf32>, vector<16x128xf32> -> vector<16x384xf32>
    %7 = arith.truncf %6 : vector<16x384xf32> to vector<16x384xbf16>
    %c0_8 = arith.constant 0 : index
    %c0_9 = arith.constant 0 : index
    %c0_10 = arith.constant 0 : index
    %8 = vector.load %arg2[%c0_8, %c0_9, %c0_10] : memref<8x384x128xbf16, #tpu.memory_space<vmem>>, vector<1x384x128xbf16>
    %9 = vector.shape_cast %8 : vector<1x384x128xbf16> to vector<384x128xbf16>
    %cst = arith.constant dense<0.000000e+00> : vector<16x128xf32>
    %10 = tpu.matmul %7, %9, %cst {dimension_numbers = #tpu.dot_dimension_numbers<[1], [0], [0], [1], [0, 0, 1, 1], [], []>} : vector<16x384xbf16>, vector<384x128xbf16>, vector<16x128xf32> -> vector<16x128xf32>
    %c0_11 = arith.constant 0 : index
    %c0_12 = arith.constant 0 : index
    %c0_13 = arith.constant 0 : index
    %11 = vector.load %arg3[%c0_11, %c0_12, %c0_13] : memref<8x1x128xf32, #tpu.memory_space<vmem>>, vector<1x1x128xf32>
    %12 = vector.shape_cast %11 : vector<1x1x128xf32> to vector<1x128xf32>
    %13 = vector.broadcast %12 : vector<1x128xf32> to vector<16x128xf32>
    %14 = arith.addf %10, %13 : vector<16x128xf32>
    %cst_14 = arith.constant 0.000000e+00 : f32
    %15 = vector.broadcast %cst_14 : f32 to vector<16x128xf32>
    %16 = arith.maximumf %14, %15 : vector<16x128xf32>
    %c0_15 = arith.constant 0 : index
    %c0_16 = arith.constant 0 : index
    %17 = vector.load %arg6[%c0_15, %c0_16] : memref<16x128xf32, #tpu.memory_space<vmem>>, vector<16x128xf32>
    tpu.vector_store %arg6[%c0_15, %c0_16], %16 {strides = array<i32>} : memref<16x128xf32, #tpu.memory_space<vmem>>, vector<16x128xf32>,
    %c1_17 = arith.constant 1 : index
    %c0_18 = arith.constant 0 : index
    %18 = vector.load %arg5[%c1_17, %c0_18] : memref<24x128xf32, #tpu.memory_space<vmem>>, vector<16x128xf32>
    tpu.vector_store %arg5[%c1_17, %c0_18], %16 {strides = array<i32>} : memref<24x128xf32, #tpu.memory_space<vmem>>, vector<16x128xf32>,
    %c0_19 = arith.constant 0 : index
    %c0_20 = arith.constant 0 : index
    %19 = vector.load %arg5[%c0_19, %c0_20] : memref<24x128xf32, #tpu.memory_space<vmem>>, vector<16x128xf32>
    %c1_21 = arith.constant 1 : index
    %c0_22 = arith.constant 0 : index
    %20 = vector.load %arg5[%c1_21, %c0_22] : memref<24x128xf32, #tpu.memory_space<vmem>>, vector<16x128xf32>
    %c2_23 = arith.constant 2 : index
    %c0_24 = arith.constant 0 : index
    %21 = vector.load %arg5[%c2_23, %c0_24] : memref<24x128xf32, #tpu.memory_space<vmem>>, vector<16x128xf32>
    %22 = tpu.concatenate %19, %20, %21 in 1 : vector<16x128xf32>, vector<16x128xf32>, vector<16x128xf32> -> vector<16x384xf32>
    %23 = arith.truncf %22 : vector<16x384xf32> to vector<16x384xbf16>
    %c1_25 = arith.constant 1 : index
    %c0_26 = arith.constant 0 : index
    %c0_27 = arith.constant 0 : index
    %24 = vector.load %arg2[%c1_25, %c0_26, %c0_27] : memref<8x384x128xbf16, #tpu.memory_space<vmem>>, vector<1x384x128xbf16>
    %25 = vector.shape_cast %24 : vector<1x384x128xbf16> to vector<384x128xbf16>
    %cst_28 = arith.constant dense<0.000000e+00> : vector<16x128xf32>
    %26 = tpu.matmul %23, %25, %cst_28 {dimension_numbers = #tpu.dot_dimension_numbers<[1], [0], [0], [1], [0, 0, 1, 1], [], []>} : vector<16x384xbf16>, vector<384x128xbf16>, vector<16x128xf32> -> vector<16x128xf32>
    %c1_29 = arith.constant 1 : index
    %c0_30 = arith.constant 0 : index
    %c0_31 = arith.constant 0 : index
    %27 = vector.load %arg3[%c1_29, %c0_30, %c0_31] : memref<8x1x128xf32, #tpu.memory_space<vmem>>, vector<1x1x128xf32>
    %28 = vector.shape_cast %27 : vector<1x1x128xf32> to vector<1x128xf32>
    %29 = vector.broadcast %28 : vector<1x128xf32> to vector<16x128xf32>
    %30 = arith.addf %26, %29 : vector<16x128xf32>
    %cst_32 = arith.constant 0.000000e+00 : f32
    %31 = vector.broadcast %cst_32 : f32 to vector<16x128xf32>
    %32 = arith.maximumf %30, %31 : vector<16x128xf32>
    %c1_33 = arith.constant 1 : index
    %c0_34 = arith.constant 0 : index
    %33 = vector.load %arg5[%c1_33, %c0_34] : memref<24x128xf32, #tpu.memory_space<vmem>>, vector<16x128xf32>
    tpu.vector_store %arg5[%c1_33, %c0_34], %32 {strides = array<i32>} : memref<24x128xf32, #tpu.memory_space<vmem>>, vector<16x128xf32>,
    %c0_35 = arith.constant 0 : index
    %c0_36 = arith.constant 0 : index
    %34 = vector.load %arg5[%c0_35, %c0_36] : memref<24x128xf32, #tpu.memory_space<vmem>>, vector<16x128xf32>
    %c1_37 = arith.constant 1 : index
    %c0_38 = arith.constant 0 : index
    %35 = vector.load %arg5[%c1_37, %c0_38] : memref<24x128xf32, #tpu.memory_space<vmem>>, vector<16x128xf32>
    %c2_39 = arith.constant 2 : index
    %c0_40 = arith.constant 0 : index
    %36 = vector.load %arg5[%c2_39, %c0_40] : memref<24x128xf32, #tpu.memory_space<vmem>>, vector<16x128xf32>
    %37 = tpu.concatenate %34, %35, %36 in 1 : vector<16x128xf32>, vector<16x128xf32>, vector<16x128xf32> -> vector<16x384xf32>
    %38 = arith.truncf %37 : vector<16x384xf32> to vector<16x384xbf16>
    %c2_41 = arith.constant 2 : index
    %c0_42 = arith.constant 0 : index
    %c0_43 = arith.constant 0 : index
    %39 = vector.load %arg2[%c2_41, %c0_42, %c0_43] : memref<8x384x128xbf16, #tpu.memory_space<vmem>>, vector<1x384x128xbf16>
    %40 = vector.shape_cast %39 : vector<1x384x128xbf16> to vector<384x128xbf16>
    %cst_44 = arith.constant dense<0.000000e+00> : vector<16x128xf32>
    %41 = tpu.matmul %38, %40, %cst_44 {dimension_numbers = #tpu.dot_dimension_numbers<[1], [0], [0], [1], [0, 0, 1, 1], [], []>} : vector<16x384xbf16>, vector<384x128xbf16>, vector<16x128xf32> -> vector<16x128xf32>
    %c2_45 = arith.constant 2 : index
    %c0_46 = arith.constant 0 : index
    %c0_47 = arith.constant 0 : index
    %42 = vector.load %arg3[%c2_45, %c0_46, %c0_47] : memref<8x1x128xf32, #tpu.memory_space<vmem>>, vector<1x1x128xf32>
    %43 = vector.shape_cast %42 : vector<1x1x128xf32> to vector<1x128xf32>
    %44 = vector.broadcast %43 : vector<1x128xf32> to vector<16x128xf32>
    %45 = arith.addf %41, %44 : vector<16x128xf32>
    %c0_48 = arith.constant 0 : index
    %c0_49 = arith.constant 0 : index
    %46 = vector.load %arg6[%c0_48, %c0_49] : memref<16x128xf32, #tpu.memory_space<vmem>>, vector<16x128xf32>
    %47 = arith.addf %45, %46 : vector<16x128xf32>
    %cst_50 = arith.constant 0.000000e+00 : f32
    %48 = vector.broadcast %cst_50 : f32 to vector<16x128xf32>
    %49 = arith.maximumf %47, %48 : vector<16x128xf32>
    %c1_51 = arith.constant 1 : index
    %c0_52 = arith.constant 0 : index
    %50 = vector.load %arg5[%c1_51, %c0_52] : memref<24x128xf32, #tpu.memory_space<vmem>>, vector<16x128xf32>
    tpu.vector_store %arg5[%c1_51, %c0_52], %49 {strides = array<i32>} : memref<24x128xf32, #tpu.memory_space<vmem>>, vector<16x128xf32>,
    %c0_53 = arith.constant 0 : index
    %c0_54 = arith.constant 0 : index
    %51 = vector.load %arg5[%c0_53, %c0_54] : memref<24x128xf32, #tpu.memory_space<vmem>>, vector<16x128xf32>
    %c1_55 = arith.constant 1 : index
    %c0_56 = arith.constant 0 : index
    %52 = vector.load %arg5[%c1_55, %c0_56] : memref<24x128xf32, #tpu.memory_space<vmem>>, vector<16x128xf32>
    %c2_57 = arith.constant 2 : index
    %c0_58 = arith.constant 0 : index
    %53 = vector.load %arg5[%c2_57, %c0_58] : memref<24x128xf32, #tpu.memory_space<vmem>>, vector<16x128xf32>
    %54 = tpu.concatenate %51, %52, %53 in 1 : vector<16x128xf32>, vector<16x128xf32>, vector<16x128xf32> -> vector<16x384xf32>
    %55 = arith.truncf %54 : vector<16x384xf32> to vector<16x384xbf16>
    %c3 = arith.constant 3 : index
    %c0_59 = arith.constant 0 : index
    %c0_60 = arith.constant 0 : index
    %56 = vector.load %arg2[%c3, %c0_59, %c0_60] : memref<8x384x128xbf16, #tpu.memory_space<vmem>>, vector<1x384x128xbf16>
    %57 = vector.shape_cast %56 : vector<1x384x128xbf16> to vector<384x128xbf16>
    %cst_61 = arith.constant dense<0.000000e+00> : vector<16x128xf32>
    %58 = tpu.matmul %55, %57, %cst_61 {dimension_numbers = #tpu.dot_dimension_numbers<[1], [0], [0], [1], [0, 0, 1, 1], [], []>} : vector<16x384xbf16>, vector<384x128xbf16>, vector<16x128xf32> -> vector<16x128xf32>
    %c3_62 = arith.constant 3 : index
    %c0_63 = arith.constant 0 : index
    %c0_64 = arith.constant 0 : index
    %59 = vector.load %arg3[%c3_62, %c0_63, %c0_64] : memref<8x1x128xf32, #tpu.memory_space<vmem>>, vector<1x1x128xf32>
    %60 = vector.shape_cast %59 : vector<1x1x128xf32> to vector<1x128xf32>
    %61 = vector.broadcast %60 : vector<1x128xf32> to vector<16x128xf32>
    %62 = arith.addf %58, %61 : vector<16x128xf32>
    %cst_65 = arith.constant 0.000000e+00 : f32
    %63 = vector.broadcast %cst_65 : f32 to vector<16x128xf32>
    %64 = arith.maximumf %62, %63 : vector<16x128xf32>
    %c1_66 = arith.constant 1 : index
    %c0_67 = arith.constant 0 : index
    %65 = vector.load %arg5[%c1_66, %c0_67] : memref<24x128xf32, #tpu.memory_space<vmem>>, vector<16x128xf32>
    tpu.vector_store %arg5[%c1_66, %c0_67], %64 {strides = array<i32>} : memref<24x128xf32, #tpu.memory_space<vmem>>, vector<16x128xf32>,
    %c0_68 = arith.constant 0 : index
    %c0_69 = arith.constant 0 : index
    %66 = vector.load %arg5[%c0_68, %c0_69] : memref<24x128xf32, #tpu.memory_space<vmem>>, vector<16x128xf32>
    %c1_70 = arith.constant 1 : index
    %c0_71 = arith.constant 0 : index
    %67 = vector.load %arg5[%c1_70, %c0_71] : memref<24x128xf32, #tpu.memory_space<vmem>>, vector<16x128xf32>
    %c2_72 = arith.constant 2 : index
    %c0_73 = arith.constant 0 : index
    %68 = vector.load %arg5[%c2_72, %c0_73] : memref<24x128xf32, #tpu.memory_space<vmem>>, vector<16x128xf32>
    %69 = tpu.concatenate %66, %67, %68 in 1 : vector<16x128xf32>, vector<16x128xf32>, vector<16x128xf32> -> vector<16x384xf32>
    %70 = arith.truncf %69 : vector<16x384xf32> to vector<16x384xbf16>
    %c4 = arith.constant 4 : index
    %c0_74 = arith.constant 0 : index
    %c0_75 = arith.constant 0 : index
    %71 = vector.load %arg2[%c4, %c0_74, %c0_75] : memref<8x384x128xbf16, #tpu.memory_space<vmem>>, vector<1x384x128xbf16>
    %72 = vector.shape_cast %71 : vector<1x384x128xbf16> to vector<384x128xbf16>
    %cst_76 = arith.constant dense<0.000000e+00> : vector<16x128xf32>
    %73 = tpu.matmul %70, %72, %cst_76 {dimension_numbers = #tpu.dot_dimension_numbers<[1], [0], [0], [1], [0, 0, 1, 1], [], []>} : vector<16x384xbf16>, vector<384x128xbf16>, vector<16x128xf32> -> vector<16x128xf32>
    %c4_77 = arith.constant 4 : index
    %c0_78 = arith.constant 0 : index
    %c0_79 = arith.constant 0 : index
    %74 = vector.load %arg3[%c4_77, %c0_78, %c0_79] : memref<8x1x128xf32, #tpu.memory_space<vmem>>, vector<1x1x128xf32>
    %75 = vector.shape_cast %74 : vector<1x1x128xf32> to vector<1x128xf32>
    %76 = vector.broadcast %75 : vector<1x128xf32> to vector<16x128xf32>
    %77 = arith.addf %73, %76 : vector<16x128xf32>
    %cst_80 = arith.constant 0.000000e+00 : f32
    %78 = vector.broadcast %cst_80 : f32 to vector<16x128xf32>
    %79 = arith.maximumf %77, %78 : vector<16x128xf32>
    %c0_81 = arith.constant 0 : index
    %c0_82 = arith.constant 0 : index
    %80 = vector.load %arg6[%c0_81, %c0_82] : memref<16x128xf32, #tpu.memory_space<vmem>>, vector<16x128xf32>
    tpu.vector_store %arg6[%c0_81, %c0_82], %79 {strides = array<i32>} : memref<16x128xf32, #tpu.memory_space<vmem>>, vector<16x128xf32>,
    %c1_83 = arith.constant 1 : index
    %c0_84 = arith.constant 0 : index
    %81 = vector.load %arg5[%c1_83, %c0_84] : memref<24x128xf32, #tpu.memory_space<vmem>>, vector<16x128xf32>
    tpu.vector_store %arg5[%c1_83, %c0_84], %79 {strides = array<i32>} : memref<24x128xf32, #tpu.memory_space<vmem>>, vector<16x128xf32>,
    %c0_85 = arith.constant 0 : index
    %c0_86 = arith.constant 0 : index
    %82 = vector.load %arg5[%c0_85, %c0_86] : memref<24x128xf32, #tpu.memory_space<vmem>>, vector<16x128xf32>
    %c1_87 = arith.constant 1 : index
    %c0_88 = arith.constant 0 : index
    %83 = vector.load %arg5[%c1_87, %c0_88] : memref<24x128xf32, #tpu.memory_space<vmem>>, vector<16x128xf32>
    %c2_89 = arith.constant 2 : index
    %c0_90 = arith.constant 0 : index
    %84 = vector.load %arg5[%c2_89, %c0_90] : memref<24x128xf32, #tpu.memory_space<vmem>>, vector<16x128xf32>
    %85 = tpu.concatenate %82, %83, %84 in 1 : vector<16x128xf32>, vector<16x128xf32>, vector<16x128xf32> -> vector<16x384xf32>
    %86 = arith.truncf %85 : vector<16x384xf32> to vector<16x384xbf16>
    %c5 = arith.constant 5 : index
    %c0_91 = arith.constant 0 : index
    %c0_92 = arith.constant 0 : index
    %87 = vector.load %arg2[%c5, %c0_91, %c0_92] : memref<8x384x128xbf16, #tpu.memory_space<vmem>>, vector<1x384x128xbf16>
    %88 = vector.shape_cast %87 : vector<1x384x128xbf16> to vector<384x128xbf16>
    %cst_93 = arith.constant dense<0.000000e+00> : vector<16x128xf32>
    %89 = tpu.matmul %86, %88, %cst_93 {dimension_numbers = #tpu.dot_dimension_numbers<[1], [0], [0], [1], [0, 0, 1, 1], [], []>} : vector<16x384xbf16>, vector<384x128xbf16>, vector<16x128xf32> -> vector<16x128xf32>
    %c5_94 = arith.constant 5 : index
    %c0_95 = arith.constant 0 : index
    %c0_96 = arith.constant 0 : index
    %90 = vector.load %arg3[%c5_94, %c0_95, %c0_96] : memref<8x1x128xf32, #tpu.memory_space<vmem>>, vector<1x1x128xf32>
    %91 = vector.shape_cast %90 : vector<1x1x128xf32> to vector<1x128xf32>
    %92 = vector.broadcast %91 : vector<1x128xf32> to vector<16x128xf32>
    %93 = arith.addf %89, %92 : vector<16x128xf32>
    %cst_97 = arith.constant 0.000000e+00 : f32
    %94 = vector.broadcast %cst_97 : f32 to vector<16x128xf32>
    %95 = arith.maximumf %93, %94 : vector<16x128xf32>
    %c1_98 = arith.constant 1 : index
    %c0_99 = arith.constant 0 : index
    %96 = vector.load %arg5[%c1_98, %c0_99] : memref<24x128xf32, #tpu.memory_space<vmem>>, vector<16x128xf32>
    tpu.vector_store %arg5[%c1_98, %c0_99], %95 {strides = array<i32>} : memref<24x128xf32, #tpu.memory_space<vmem>>, vector<16x128xf32>,
    %c0_100 = arith.constant 0 : index
    %c0_101 = arith.constant 0 : index
    %97 = vector.load %arg5[%c0_100, %c0_101] : memref<24x128xf32, #tpu.memory_space<vmem>>, vector<16x128xf32>
    %c1_102 = arith.constant 1 : index
    %c0_103 = arith.constant 0 : index
    %98 = vector.load %arg5[%c1_102, %c0_103] : memref<24x128xf32, #tpu.memory_space<vmem>>, vector<16x128xf32>
    %c2_104 = arith.constant 2 : index
    %c0_105 = arith.constant 0 : index
    %99 = vector.load %arg5[%c2_104, %c0_105] : memref<24x128xf32, #tpu.memory_space<vmem>>, vector<16x128xf32>
    %100 = tpu.concatenate %97, %98, %99 in 1 : vector<16x128xf32>, vector<16x128xf32>, vector<16x128xf32> -> vector<16x384xf32>
    %101 = arith.truncf %100 : vector<16x384xf32> to vector<16x384xbf16>
    %c6 = arith.constant 6 : index
    %c0_106 = arith.constant 0 : index
    %c0_107 = arith.constant 0 : index
    %102 = vector.load %arg2[%c6, %c0_106, %c0_107] : memref<8x384x128xbf16, #tpu.memory_space<vmem>>, vector<1x384x128xbf16>
    %103 = vector.shape_cast %102 : vector<1x384x128xbf16> to vector<384x128xbf16>
    %cst_108 = arith.constant dense<0.000000e+00> : vector<16x128xf32>
    %104 = tpu.matmul %101, %103, %cst_108 {dimension_numbers = #tpu.dot_dimension_numbers<[1], [0], [0], [1], [0, 0, 1, 1], [], []>} : vector<16x384xbf16>, vector<384x128xbf16>, vector<16x128xf32> -> vector<16x128xf32>
    %c6_109 = arith.constant 6 : index
    %c0_110 = arith.constant 0 : index
    %c0_111 = arith.constant 0 : index
    %105 = vector.load %arg3[%c6_109, %c0_110, %c0_111] : memref<8x1x128xf32, #tpu.memory_space<vmem>>, vector<1x1x128xf32>
    %106 = vector.shape_cast %105 : vector<1x1x128xf32> to vector<1x128xf32>
    %107 = vector.broadcast %106 : vector<1x128xf32> to vector<16x128xf32>
    %108 = arith.addf %104, %107 : vector<16x128xf32>
    %c0_112 = arith.constant 0 : index
    %c0_113 = arith.constant 0 : index
    %109 = vector.load %arg6[%c0_112, %c0_113] : memref<16x128xf32, #tpu.memory_space<vmem>>, vector<16x128xf32>
    %110 = arith.addf %108, %109 : vector<16x128xf32>
    %cst_114 = arith.constant 0.000000e+00 : f32
    %111 = vector.broadcast %cst_114 : f32 to vector<16x128xf32>
    %112 = arith.maximumf %110, %111 : vector<16x128xf32>
    %c1_115 = arith.constant 1 : index
    %c0_116 = arith.constant 0 : index
    %113 = vector.load %arg5[%c1_115, %c0_116] : memref<24x128xf32, #tpu.memory_space<vmem>>, vector<16x128xf32>
    tpu.vector_store %arg5[%c1_115, %c0_116], %112 {strides = array<i32>} : memref<24x128xf32, #tpu.memory_space<vmem>>, vector<16x128xf32>,
    %c0_117 = arith.constant 0 : index
    %c0_118 = arith.constant 0 : index
    %114 = vector.load %arg5[%c0_117, %c0_118] : memref<24x128xf32, #tpu.memory_space<vmem>>, vector<16x128xf32>
    %c1_119 = arith.constant 1 : index
    %c0_120 = arith.constant 0 : index
    %115 = vector.load %arg5[%c1_119, %c0_120] : memref<24x128xf32, #tpu.memory_space<vmem>>, vector<16x128xf32>
    %c2_121 = arith.constant 2 : index
    %c0_122 = arith.constant 0 : index
    %116 = vector.load %arg5[%c2_121, %c0_122] : memref<24x128xf32, #tpu.memory_space<vmem>>, vector<16x128xf32>
    %117 = tpu.concatenate %114, %115, %116 in 1 : vector<16x128xf32>, vector<16x128xf32>, vector<16x128xf32> -> vector<16x384xf32>
    %118 = arith.truncf %117 : vector<16x384xf32> to vector<16x384xbf16>
    %c7 = arith.constant 7 : index
    %c0_123 = arith.constant 0 : index
    %c0_124 = arith.constant 0 : index
    %119 = vector.load %arg2[%c7, %c0_123, %c0_124] : memref<8x384x128xbf16, #tpu.memory_space<vmem>>, vector<1x384x128xbf16>
    %120 = vector.shape_cast %119 : vector<1x384x128xbf16> to vector<384x128xbf16>
    %cst_125 = arith.constant dense<0.000000e+00> : vector<16x128xf32>
    %121 = tpu.matmul %118, %120, %cst_125 {dimension_numbers = #tpu.dot_dimension_numbers<[1], [0], [0], [1], [0, 0, 1, 1], [], []>} : vector<16x384xbf16>, vector<384x128xbf16>, vector<16x128xf32> -> vector<16x128xf32>
    %c7_126 = arith.constant 7 : index
    %c0_127 = arith.constant 0 : index
    %c0_128 = arith.constant 0 : index
    %122 = vector.load %arg3[%c7_126, %c0_127, %c0_128] : memref<8x1x128xf32, #tpu.memory_space<vmem>>, vector<1x1x128xf32>
    %123 = vector.shape_cast %122 : vector<1x1x128xf32> to vector<1x128xf32>
    %124 = vector.broadcast %123 : vector<1x128xf32> to vector<16x128xf32>
    %125 = arith.addf %121, %124 : vector<16x128xf32>
    %cst_129 = arith.constant 0.000000e+00 : f32
    %126 = vector.broadcast %cst_129 : f32 to vector<16x128xf32>
    %127 = arith.maximumf %125, %126 : vector<16x128xf32>
    %c0_130 = arith.constant 0 : index
    %c0_131 = arith.constant 0 : index
    %c0_132 = arith.constant 0 : index
    %128 = vector.load %arg4[%c0_130, %c0_131, %c0_132] : memref<1x16x128xf32, #tpu.memory_space<vmem>>, vector<1x16x128xf32>
    %129 = vector.shape_cast %128 : vector<1x16x128xf32> to vector<16x128xf32>
    %130 = vector.shape_cast %127 : vector<16x128xf32> to vector<1x16x128xf32>
    tpu.vector_store %arg4[%c0_130, %c0_131, %c0_132], %130 {strides = array<i32>} : memref<1x16x128xf32, #tpu.memory_space<vmem>>, vector<1x16x128xf32>,
    return
  }
  func.func @transform_0(%arg0: i32) -> (i32, i32, i32) {
    %c0_i32 = arith.constant 0 : i32
    %c0_i32_0 = arith.constant 0 : i32
    %c0_i32_1 = arith.constant 0 : i32
    return %arg0, %c0_i32, %c0_i32_0 : i32, i32, i32
  }
  func.func @transform_1(%arg0: i32) -> (i32, i32, i32) {
    %c0_i32 = arith.constant 0 : i32
    %c0_i32_0 = arith.constant 0 : i32
    %c0_i32_1 = arith.constant 0 : i32
    %c0_i32_2 = arith.constant 0 : i32
    return %c0_i32, %c0_i32_0, %c0_i32_1 : i32, i32, i32
  }
  func.func @transform_2(%arg0: i32) -> (i32, i32, i32) {
    %c0_i32 = arith.constant 0 : i32
    %c0_i32_0 = arith.constant 0 : i32
    %c0_i32_1 = arith.constant 0 : i32
    %c0_i32_2 = arith.constant 0 : i32
    return %c0_i32, %c0_i32_0, %c0_i32_1 : i32, i32, i32
  }
  func.func @transform_3(%arg0: i32) -> (i32, i32, i32) {
    %c0_i32 = arith.constant 0 : i32
    %c0_i32_0 = arith.constant 0 : i32
    %c0_i32_1 = arith.constant 0 : i32
    return %arg0, %c0_i32, %c0_i32_0 : i32, i32, i32
  }
}

</mosaic_0001>

<llo_original>
// kernel: residual_conv_forward.1
$region0: #{residual_conv_forward.1}
  #allocation0 [shape = 'u32[]', space=smem, size = 0x4, offset = 0x4, fixed_abs, tag = 'smem constant byte address 0x4 - core index']
  #allocation1 [shape = 'u32[144,128]{1,0:T(1,128)}', space=vmem, size = 0x12000, scoped, tag = 'internal scratch']
  #allocation2 [shape = 'f32[24,128]{1,0:T(8,128)}', space=vmem, size = 0x3000, scoped, tag = 'scratch operand']
  #allocation3 [shape = 'f32[16,128]{1,0:T(8,128)}', space=vmem, size = 0x2000, scoped, tag = 'scratch operand']
  %s0 = inlined_call_operand.vmem [shape: f32[2,24,128], index: 0, kind: input, shape index: {}]
  %s1 = inlined_call_operand.hbm [shape: bf16[8,384,128], index: 1, kind: input, shape index: {}]
  %s2 = inlined_call_operand.vmem [shape: f32[8,1,128], index: 2, kind: input, shape index: {}]
  %s3 = inlined_call_operand.vmem [shape: f32[2,16,128], index: 3, kind: output, shape index: {}]
  %s4 = sld [smem:[#allocation0]]
  $region49: #{residual_conv_forward.1} parent=0
    _
  %s6 = ssub.s32 1, %s4
  %s7 = scalar_select 0, %s6, %s4
  $region1: #{residual_conv_forward.1} parent=0
    #allocation4 [shape = 'u8[786432]{0}', space=vmem, size = 0xc0000, scoped, tag = 'input window, operand 1, single buffered']
    #allocation5 [shape = 's32[2]{0}', space=sflag, size = 0x8, scoped, tag = 'scoped memory for residual_conv_forward.1']
    %8 = vsyncpa [#allocation5], 0
    loop: start=0, step=1, limit=4
    $region2: #{residual_conv_forward.1} parent=1 // loop_pre_header
      _
    $region3: #{residual_conv_forward.1} parent=1 // loop_header
      %s10 = sphi 0, %s14
      %p11 = scmp.ge.s32.totalorder %s10, 4
      %s20 = sphi 0, %s22
      %s23 = sphi 0, %s20
      %s24 = sphi 0, %s23
      %s40 = sphi 0, %s24
      %s44 = sphi 0, %s44
      %s46 = sphi 0, %s44
      %s47 = sphi 0, %s46
      %s61 = sphi 0, %s47
      %s65 = sphi 0, %s65
      %s67 = sphi 0, %s65
      %s68 = sphi 0, %s67
      %s82 = sphi 0, %s68
      %s88 = sphi 0, %s90
      %s91 = sphi 0, %s88
      %s92 = sphi 0, %s91
      %s108 = sphi 0, %s92
    $region4: #{residual_conv_forward.1} parent=1 // loop_header_branch
      %13 = sbr.rel (%p11) target = $region8
    $region5: #{residual_conv_forward.1} parent=1 // loop_body
      %s15 = ssub.s32 %s10, 1
      %s16 = ssub.s32 %s10, 2
      %s17 = sadd.s32 %s10, 1
      %s18 = ssub.s32 %s10, %s17
      %p19 = scmp.eq.s32.totalorder %s18, 0
      %s21 = sadd.s32 %s20, 1
      %s22 = scalar_select %p19, %s20, %s21
      %p25 = pneg %p19
      %p26 = scmp.eq.s32.totalorder %s10, 1
      %p27 = por %p25, %p26
      %p28 = scmp.ne.s32.totalorder %s20, %s23
      %p29 = scmp.eq.s32.totalorder %s10, 0
      %p30 = por %p28, %p29
      %p31 = scmp.ne.s32.totalorder %s20, %s23
      %p32 = scmp.eq.s32.totalorder %s15, 1
      %p33 = por %p31, %p32
      %p34 = scmp.ne.s32.totalorder %s23, %s24
      %p35 = scmp.eq.s32.totalorder %s15, 0
      %p36 = por %p34, %p35
      %p37 = scmp.ne.s32.totalorder %s23, %s24
      %p38 = scmp.eq.s32.totalorder %s16, 1
      %p39 = por %p37, %p38
      %p41 = scmp.ne.s32.totalorder %s24, %s40
      %p42 = scmp.eq.s32.totalorder %s16, 0
      %p43 = por %p41, %p42
      %s45 = sadd.s32 %s44, 1
      %p48 = scmp.eq.s32.totalorder %s10, 1
      %p49 = scmp.ne.s32.totalorder %s44, %s46
      %p50 = scmp.eq.s32.totalorder %s10, 0
      %p51 = por %p49, %p50
      %p52 = scmp.ne.s32.totalorder %s44, %s46
      %p53 = scmp.eq.s32.totalorder %s15, 1
      %p54 = por %p52, %p53
      %p55 = scmp.ne.s32.totalorder %s46, %s47
      %p56 = scmp.eq.s32.totalorder %s15, 0
      %p57 = por %p55, %p56
      %p58 = scmp.ne.s32.totalorder %s46, %s47
      %p59 = scmp.eq.s32.totalorder %s16, 1
      %p60 = por %p58, %p59
      %p62 = scmp.ne.s32.totalorder %s47, %s61
      %p63 = scmp.eq.s32.totalorder %s16, 0
      %p64 = por %p62, %p63
      %s66 = sadd.s32 %s65, 1
      %p69 = scmp.eq.s32.totalorder %s10, 1
      %p70 = scmp.ne.s32.totalorder %s65, %s67
      %p71 = scmp.eq.s32.totalorder %s10, 0
      %p72 = por %p70, %p71
      %p73 = scmp.ne.s32.totalorder %s65, %s67
      %p74 = scmp.eq.s32.totalorder %s15, 1
      %p75 = por %p73, %p74
      %p76 = scmp.ne.s32.totalorder %s67, %s68
      %p77 = scmp.eq.s32.totalorder %s15, 0
      %p78 = por %p76, %p77
      %p79 = scmp.ne.s32.totalorder %s67, %s68
      %p80 = scmp.eq.s32.totalorder %s16, 1
      %p81 = por %p79, %p80
      %p83 = scmp.ne.s32.totalorder %s68, %s82
      %p84 = scmp.eq.s32.totalorder %s16, 0
      %p85 = por %p83, %p84
      %s86 = ssub.s32 %s10, %s17
      %p87 = scmp.eq.s32.totalorder %s86, 0
      %s89 = sadd.s32 %s88, 1
      %s90 = scalar_select %p87, %s88, %s89
      %p93 = pneg %p87
      %p94 = scmp.eq.s32.totalorder %s10, 1
      %p95 = por %p93, %p94
      %p96 = scmp.ne.s32.totalorder %s88, %s91
      %p97 = scmp.eq.s32.totalorder %s10, 0
      %p98 = por %p96, %p97
      %p99 = scmp.ne.s32.totalorder %s88, %s91
      %p100 = scmp.eq.s32.totalorder %s15, 1
      %p101 = por %p99, %p100
      %p102 = scmp.ne.s32.totalorder %s91, %s92
      %p103 = scmp.eq.s32.totalorder %s15, 0
      %p104 = por %p102, %p103
      %p105 = scmp.ne.s32.totalorder %s91, %s92
      %p106 = scmp.eq.s32.totalorder %s16, 1
      %p107 = por %p105, %p106
      %p109 = scmp.ne.s32.totalorder %s92, %s108
      %p110 = scmp.eq.s32.totalorder %s16, 0
      %p111 = por %p109, %p110
      %p112 = scmp.le.s32.totalorder 1, %s10
      %p113 = scmp.lt.s32.totalorder %s10, 3
      %p114 = pnand %p112, %p113
      %p115 = pneg %p114
      // Predicated region
      $region9: #{residual_conv_forward.1} parent=5 // pred_check
        _
      $region10: #{residual_conv_forward.1} parent=5 // pred_check_branch
        %117 = sbr.rel (%p114) target = $region12
      $region11: #{residual_conv_forward.1} parent=5 // pred_region
        %s118 = ssub.s32 %s10, 1
        // Predicated region
        $region13: #{residual_conv_forward.1} parent=11 // pred_check
          %p119 = pneg %p57
        $region14: #{residual_conv_forward.1} parent=11 // pred_check_branch
          %121 = sbr.rel (%p119) target = $region16
        $region15: #{residual_conv_forward.1} parent=11 // pred_region
          %s123 = ssub.s32 24576, 24576
          %124 = vsyncadd [#allocation5], %s123
          %s125 = sshll.u32 [#allocation4], 4
          %s126 = int_to_ptr.vmem [resolvable:$true] %s125
          %131 = dma.hbm_to_vmem [thread:$0]  %s1, 24576, %s126, [#allocation5], 64, 64, 4
        $region16: #{residual_conv_forward.1} parent=11 // pred_fallthru
          _
        // Predicated region
        $region17: #{residual_conv_forward.1} parent=11 // pred_check
          %p132 = pneg %p78
        $region18: #{residual_conv_forward.1} parent=11 // pred_check_branch
          %134 = sbr.rel (%p132) target = $region20
        $region19: #{residual_conv_forward.1} parent=11 // pred_region
          _
        $region20: #{residual_conv_forward.1} parent=11 // pred_fallthru
          _
      $region12: #{residual_conv_forward.1} parent=5 // pred_fallthru
        _
      %p135 = scmp.lt.s32.totalorder %s10, 2
      // Predicated region
      $region21: #{residual_conv_forward.1} parent=5 // pred_check
        %p136 = pneg %p135
      $region22: #{residual_conv_forward.1} parent=5 // pred_check_branch
        %138 = sbr.rel (%p136) target = $region24
      $region23: #{residual_conv_forward.1} parent=5 // pred_region
        // Predicated region
        $region25: #{residual_conv_forward.1} parent=23 // pred_check
          %p139 = pneg %p30
        $region26: #{residual_conv_forward.1} parent=23 // pred_check_branch
          %141 = sbr.rel (%p139) target = $region28
        $region27: #{residual_conv_forward.1} parent=23 // pred_region
          %p142 = scmp.lt.s32.totalorder %s10, 1
          %s143 = scalar_select %p142, %s10, 1
          %s144 = smul.addr %s143, 3
          %s145 = smul.addr %s144, 8
          %s146 = scalar_lea.vmem %s0, %s145
        $region28: #{residual_conv_forward.1} parent=23 // pred_fallthru
          _
      $region24: #{residual_conv_forward.1} parent=5 // pred_fallthru
        _
      %p147 = scmp.le.s32.totalorder 1, %s10
      %p148 = scmp.lt.s32.totalorder %s10, 3
      %p149 = pnand %p147, %p148
      %p150 = pneg %p149
      // Predicated region
      $region29: #{residual_conv_forward.1} parent=5 // pred_check
        _
      $region30: #{residual_conv_forward.1} parent=5 // pred_check_branch
        %152 = sbr.rel (%p149) target = $region32
      $region31: #{residual_conv_forward.1} parent=5 // pred_region
        %s153 = ssub.s32 %s10, 1
        // Predicated region
        $region33: #{residual_conv_forward.1} parent=31 // pred_check
          %p154 = pneg %p57
        $region34: #{residual_conv_forward.1} parent=31 // pred_check_branch
          %156 = sbr.rel (%p154) target = $region36
        $region35: #{residual_conv_forward.1} parent=31 // pred_region
          %157 = dma.done [#allocation5], 24576
        $region36: #{residual_conv_forward.1} parent=31 // pred_fallthru
          _
        %p158 = scmp.lt.s32.totalorder %s15, 1
        %s159 = scalar_select %p158, %s15, 1
        %s160 = smul.addr %s159, 3
        %s161 = smul.addr %s160, 8
        %s162 = scalar_lea.vmem %s0, %s161
        %p163 = pneg %p36
        %p164 = pneg %p33
        %p165 = pneg %p57
        %p166 = pneg %p54
        %p167 = pneg %p78
        %p168 = pneg %p75
        %p169 = pneg %p104
        %p170 = pneg %p101
        %p171 = scmp.lt.s32.totalorder %s15, 1
        %s172 = scalar_select %p171, %s15, 1
        %s173 = smul.addr %s172, 2
        %s174 = smul.addr %s173, 8
        %s175 = scalar_lea.vmem %s3, %s174
        %p176 = scmp.lt.s32.totalorder %s15, 1
        %s177 = scalar_select %p176, %s15, 1
        %s178 = smul.addr %s177, 3
        %s179 = smul.addr %s178, 8
        %s180 = scalar_lea.vmem %s0, %s179
        %p181 = scmp.lt.s32.totalorder %s15, 1
        %s182 = scalar_select %p181, %s15, 1
        %s183 = smul.addr %s182, 2
        %s184 = smul.addr %s183, 8
        %s185 = scalar_lea.vmem %s3, %s184
        %v187 = vld [vmem:[%s180] sm:$0xff]
        %v188 = vld [vmem:[%s180 + $0x8] sm:$0xff]
        %v189 = vld [vmem:[%s180 + $0x10] sm:$0xff]
        %190 = vst [vmem:[#allocation2] sm:$0xff] %v187
        %191 = vst [vmem:[#allocation2 + $0x8] sm:$0xff] %v188
        %192 = vst [vmem:[#allocation2 + $0x10] sm:$0xff] %v189
        %v193 = vld [vmem:[#allocation2] sm:$0xff]
        %v194 = vld [vmem:[#allocation2 + $0x8] sm:$0xff]
        %v195 = vld [vmem:[#allocation2 + $0x1] sm:$0xff]
        %v196 = vld [vmem:[#allocation2 + $0x9] sm:$0xff]
        %v197 = vld [vmem:[#allocation2 + $0x2] sm:$0xff]
        %v198 = vld [vmem:[#allocation2 + $0xa] sm:$0xff]
        %v199 = vpack.c.bf16 %v194, %v193
        %v200 = vpack.c.bf16 %v196, %v195
        %v201 = vpack.c.bf16 %v198, %v197
        %v202 = vld [vmem:[#allocation4] sm:$0xf]
        %v203 = vld [vmem:[#allocation4 + $0x4] sm:$0xf]
        %v204 = vld [vmem:[#allocation4 + $0x8] sm:$0xf]
        %v205 = vld [vmem:[#allocation4 + $0xc] sm:$0xf]
        %v206 = vld [vmem:[#allocation4 + $0x10] sm:$0xf]
        %v207 = vld [vmem:[#allocation4 + $0x14] sm:$0xf]
        %v208 = vld [vmem:[#allocation4 + $0x18] sm:$0xf]
        %v209 = vld [vmem:[#allocation4 + $0x1c] sm:$0xf]
        %v210 = vld [vmem:[#allocation4 + $0x20] sm:$0xf]
        %v211 = vld [vmem:[#allocation4 + $0x24] sm:$0xf]
        %v212 = vld [vmem:[#allocation4 + $0x28] sm:$0xf]
        %v213 = vld [vmem:[#allocation4 + $0x2c] sm:$0xf]
        %v214 = vld [vmem:[#allocation4 + $0x30] sm:$0xf]
        %v215 = vld [vmem:[#allocation4 + $0x34] sm:$0xf]
        %v216 = vld [vmem:[#allocation4 + $0x38] sm:$0xf]
        %v217 = vld [vmem:[#allocation4 + $0x3c] sm:$0xf]
        %v218 = vld [vmem:[#allocation4 + $0x40] sm:$0xf]
        %v219 = vld [vmem:[#allocation4 + $0x44] sm:$0xf]
        %v220 = vld [vmem:[#allocation4 + $0x48] sm:$0xf]
        %v221 = vld [vmem:[#allocation4 + $0x4c] sm:$0xf]
        %v222 = vld [vmem:[#allocation4 + $0x50] sm:$0xf]
        %v223 = vld [vmem:[#allocation4 + $0x54] sm:$0xf]
        %v224 = vld [vmem:[#allocation4 + $0x58] sm:$0xf]
        %v225 = vld [vmem:[#allocation4 + $0x5c] sm:$0xf]
        %v226 = vld [vmem:[#allocation4 + $0x60] sm:$0xf]
        %v227 = vld [vmem:[#allocation4 + $0x64] sm:$0xf]
        %v228 = vld [vmem:[#allocation4 + $0x68] sm:$0xf]
        %v229 = vld [vmem:[#allocation4 + $0x6c] sm:$0xf]
        %v230 = vld [vmem:[#allocation4 + $0x70] sm:$0xf]
        %v231 = vld [vmem:[#allocation4 + $0x74] sm:$0xf]
        %v232 = vld [vmem:[#allocation4 + $0x78] sm:$0xf]
        %v233 = vld [vmem:[#allocation4 + $0x7c] sm:$0xf]
        %v234 = vld [vmem:[#allocation4 + $0x80] sm:$0xf]
        %v235 = vld [vmem:[#allocation4 + $0x84] sm:$0xf]
        %v236 = vld [vmem:[#allocation4 + $0x88] sm:$0xf]
        %v237 = vld [vmem:[#allocation4 + $0x8c] sm:$0xf]
        %v238 = vld [vmem:[#allocation4 + $0x90] sm:$0xf]
        %v239 = vld [vmem:[#allocation4 + $0x94] sm:$0xf]
        %v240 = vld [vmem:[#allocation4 + $0x98] sm:$0xf]
        %v241 = vld [vmem:[#allocation4 + $0x9c] sm:$0xf]
        %v242 = vld [vmem:[#allocation4 + $0xa0] sm:$0xf]
        %v243 = vld [vmem:[#allocation4 + $0xa4] sm:$0xf]
        %v244 = vld [vmem:[#allocation4 + $0xa8] sm:$0xf]
        %v245 = vld [vmem:[#allocation4 + $0xac] sm:$0xf]
        %v246 = vld [vmem:[#allocation4 + $0xb0] sm:$0xf]
        %v247 = vld [vmem:[#allocation4 + $0xb4] sm:$0xf]
        %v248 = vld [vmem:[#allocation4 + $0xb8] sm:$0xf]
        %v249 = vld [vmem:[#allocation4 + $0xbc] sm:$0xf]
        %v250 = vld [vmem:[%s2] sm:$0x1]
        %v252 = vlaneseq
        %v253 = vshrl.u32 %v252, 7
        %v254 = vsub.s32 0, %v253
        %v255 = vrot.slane %v250, %v254
        %v305 = vunpack.c.l.b16 %v202
        %v306 = vunpack.c.l.b16 %v203
        %v307 = vunpack.c.l.b16 %v204
        %v308 = vunpack.c.l.b16 %v205
        %v309 = vunpack.c.l.b16 %v206
        %v310 = vunpack.c.l.b16 %v207
        %v311 = vunpack.c.l.b16 %v208
        %v312 = vunpack.c.l.b16 %v209
        %v313 = vunpack.c.l.b16 %v210
        %v314 = vunpack.c.l.b16 %v211
        %v315 = vunpack.c.l.b16 %v212
        %v316 = vunpack.c.l.b16 %v213
        %v317 = vunpack.c.l.b16 %v214
        %v318 = vunpack.c.l.b16 %v215
        %v319 = vunpack.c.l.b16 %v216
        %v320 = vunpack.c.l.b16 %v217
        %v321 = vunpack.c.l.b16 %v218
        %v322 = vunpack.c.l.b16 %v219
        %v323 = vunpack.c.l.b16 %v220
        %v324 = vunpack.c.l.b16 %v221
        %v325 = vunpack.c.l.b16 %v222
        %v326 = vunpack.c.l.b16 %v223
        %v327 = vunpack.c.l.b16 %v224
        %v328 = vunpack.c.l.b16 %v225
        %v329 = vunpack.c.l.b16 %v226
        %v330 = vunpack.c.l.b16 %v227
        %v331 = vunpack.c.l.b16 %v228
        %v332 = vunpack.c.l.b16 %v229
        %v333 = vunpack.c.l.b16 %v230
        %v334 = vunpack.c.l.b16 %v231
        %v335 = vunpack.c.l.b16 %v232
        %v336 = vunpack.c.l.b16 %v233
        %v337 = vunpack.c.l.b16 %v234
        %v338 = vunpack.c.l.b16 %v235
        %v339 = vunpack.c.l.b16 %v236
        %v340 = vunpack.c.l.b16 %v237
        %v341 = vunpack.c.l.b16 %v238
        %v342 = vunpack.c.l.b16 %v239
        %v343 = vunpack.c.l.b16 %v240
        %v344 = vunpack.c.l.b16 %v241
        %v345 = vunpack.c.l.b16 %v242
        %v346 = vunpack.c.l.b16 %v243
        %v347 = vunpack.c.l.b16 %v244
        %v348 = vunpack.c.l.b16 %v245
        %v349 = vunpack.c.l.b16 %v246
        %v350 = vunpack.c.l.b16 %v247
        %v351 = vunpack.c.l.b16 %v248
        %v352 = vunpack.c.l.b16 %v249
        %v353 = vpack.c.b16 %v306, %v305
        %v354 = vpack.c.b16 %v308, %v307
        %v355 = vpack.c.b16 %v310, %v309
        %v356 = vpack.c.b16 %v312, %v311
        %v357 = vpack.c.b16 %v314, %v313
        %v358 = vpack.c.b16 %v316, %v315
        %v359 = vpack.c.b16 %v318, %v317
        %v360 = vpack.c.b16 %v320, %v319
        %v361 = vpack.c.b16 %v322, %v321
        %v362 = vpack.c.b16 %v324, %v323
        %v363 = vpack.c.b16 %v326, %v325
        %v364 = vpack.c.b16 %v328, %v327
        %v365 = vpack.c.b16 %v330, %v329
        %v366 = vpack.c.b16 %v332, %v331
        %v367 = vpack.c.b16 %v334, %v333
        %v368 = vpack.c.b16 %v336, %v335
        %v369 = vpack.c.b16 %v338, %v337
        %v370 = vpack.c.b16 %v340, %v339
        %v371 = vpack.c.b16 %v342, %v341
        %v372 = vpack.c.b16 %v344, %v343
        %v373 = vpack.c.b16 %v346, %v345
        %v374 = vpack.c.b16 %v348, %v347
        %v375 = vpack.c.b16 %v350, %v349
        %v376 = vpack.c.b16 %v352, %v351
        %401 = vmatprep.subr.bf16.mxu0 0
        %402 = vmatpush1.bf16.msra.mxu0 %v353
        %403 = vmatprep.subr.bf16.mxu0 0
        %404 = vmatpush1.bf16.msra.mxu0 %v354
        %405 = vmatprep.subr.bf16.mxu0 0
        %406 = vmatpush1.bf16.msra.mxu0 %v355
        %407 = vmatprep.subr.bf16.mxu0 0
        %408 = vmatpush1.bf16.msra.mxu0 %v356
        %409 = vmatprep.subr.bf16.mxu0 0
        %410 = vmatpush1.bf16.msra.mxu0 %v357
        %411 = vmatprep.subr.bf16.mxu0 0
        %412 = vmatpush1.bf16.msra.mxu0 %v358
        %413 = vmatprep.subr.bf16.mxu0 0
        %414 = vmatpush1.bf16.msra.mxu0 %v359
        %415 = vmatprep.subr.bf16.mxu0 0
        %416 = vmatpush1.bf16.msra.mxu0 %v360
        %417 = vmatprep.subr.bf16.mxu0 0
        %418 = vmatpush1.bf16.msra.mxu0 %v361
        %419 = vmatprep.subr.bf16.mxu0 0
        %420 = vmatpush1.bf16.msra.mxu0 %v362
        %421 = vmatprep.subr.bf16.mxu0 0
        %422 = vmatpush1.bf16.msra.mxu0 %v363
        %423 = vmatprep.subr.bf16.mxu0 0
        %424 = vmatpush1.bf16.msra.mxu0 %v364
        %425 = vmatprep.subr.bf16.mxu0 0
        %426 = vmatpush1.bf16.msra.mxu0 %v365
        %427 = vmatprep.subr.bf16.mxu0 0
        %428 = vmatpush1.bf16.msra.mxu0 %v366
        %429 = vmatprep.subr.bf16.mxu0 0
        %430 = vmatpush1.bf16.msra.mxu0 %v367
        %431 = vmatprep.subr.bf16.mxu0 0
        %432 = vmatpush1.bf16.msra.mxu0 %v368
        %433 = vmatprep.mubr.bf16.mxu0 %v200
        %434 = vmatmul.mubr.bf16.gmra.mrb[0].mxu0 %v199
        %v435 = vpop.f32.mrb[0].mxu0
        %v436 = vadd.f32 %v255, %v435
        %v437 = vpop.f32.mrb[0].mxu0
        %v438 = vpop.f32.mrb[0].mxu0
        %v439 = vadd.f32 %v255, %v438
        %v440 = vpop.f32.mrb[0].mxu0
        %441 = vdwg.mxu0
        %442 = vmatprep.subr.bf16.mxu0 0
        %443 = vmatpush1.bf16.msra.mxu0 %v369
        %444 = vmatprep.subr.bf16.mxu0 0
        %445 = vmatpush1.bf16.msra.mxu0 %v370
        %446 = vmatprep.subr.bf16.mxu0 0
        %447 = vmatpush1.bf16.msra.mxu0 %v371
        %448 = vmatprep.subr.bf16.mxu0 0
        %449 = vmatpush1.bf16.msra.mxu0 %v372
        %450 = vmatprep.subr.bf16.mxu0 0
        %451 = vmatpush1.bf16.msra.mxu0 %v373
        %452 = vmatprep.subr.bf16.mxu0 0
        %453 = vmatpush1.bf16.msra.mxu0 %v374
        %454 = vmatprep.subr.bf16.mxu0 0
        %455 = vmatpush1.bf16.msra.mxu0 %v375
        %456 = vmatprep.subr.bf16.mxu0 0
        %457 = vmatpush1.bf16.msra.mxu0 %v376
        %458 = vmatprep.subr.bf16.mxu0 0
        %459 = vmatpush1.bf16.msra.mxu0 0
        %460 = vmatprep.subr.bf16.mxu0 0
        %461 = vmatpush1.bf16.msra.mxu0 0
        %462 = vmatprep.subr.bf16.mxu0 0
        %463 = vmatpush1.bf16.msra.mxu0 0
        %464 = vmatprep.subr.bf16.mxu0 0
        %465 = vmatpush1.bf16.msra.mxu0 0
        %466 = vmatprep.subr.bf16.mxu0 0
        %467 = vmatpush1.bf16.msra.mxu0 0
        %468 = vmatprep.subr.bf16.mxu0 0
        %469 = vmatpush1.bf16.msra.mxu0 0
        %470 = vmatprep.subr.bf16.mxu0 0
        %471 = vmatpush1.bf16.msra.mxu0 0
        %472 = vmatprep.subr.bf16.mxu0 0
        %473 = vmatpush1.bf16.msra.mxu0 0
        %474 = vmatprep.mubr.bf16.mxu0 0
        %475 = vmatmul.mubr.bf16.gmra.mrb[0].mxu0 %v201
        %v476 = vpop.f32.mrb[0].mxu0
        %v477 = vadd.f32 %v436, %v476
        %v478 = vpop.f32.mrb[0].mxu0
        %v479 = vpop.f32.mrb[0].mxu0
        %v480 = vadd.f32 %v439, %v479
        %v481 = vpop.f32.mrb[0].mxu0
        %482 = vdwg.mxu0
        %v483 = vmax.f32 %v477, 0.0
        %v484 = vmax.f32 %v480, 0.0
        %485 = vst [vmem:[#allocation3] sm:$0xff] %v483
        %486 = vst [vmem:[#allocation3 + $0x8] sm:$0xff] %v484
        %487 = vst [vmem:[#allocation2 + $0x1] sm:$0xff] %v483
        %488 = vst [vmem:[#allocation2 + $0x9] sm:$0xff] %v484
        %v489 = vld [vmem:[#allocation2] sm:$0xff]
        %v490 = vld [vmem:[#allocation2 + $0x8] sm:$0xff]
        %v491 = vld [vmem:[#allocation2 + $0x1] sm:$0xff]
        %v492 = vld [vmem:[#allocation2 + $0x9] sm:$0xff]
        %v493 = vld [vmem:[#allocation2 + $0x2] sm:$0xff]
        %v494 = vld [vmem:[#allocation2 + $0xa] sm:$0xff]
        %v495 = vpack.c.bf16 %v490, %v489
        %v496 = vpack.c.bf16 %v492, %v491
        %v497 = vpack.c.bf16 %v494, %v493
        %s498 = scalar_lea.vmem [#allocation4], 192
        %v499 = vld [vmem:[%s498] sm:$0xf]
        %v500 = vld [vmem:[%s498 + $0x4] sm:$0xf]
        %v501 = vld [vmem:[%s498 + $0x8] sm:$0xf]
        %v502 = vld [vmem:[%s498 + $0xc] sm:$0xf]
        %v503 = vld [vmem:[%s498 + $0x10] sm:$0xf]
        %v504 = vld [vmem:[%s498 + $0x14] sm:$0xf]
        %v505 = vld [vmem:[%s498 + $0x18] sm:$0xf]
        %v506 = vld [vmem:[%s498 + $0x1c] sm:$0xf]
        %v507 = vld [vmem:[%s498 + $0x20] sm:$0xf]
        %v508 = vld [vmem:[%s498 + $0x24] sm:$0xf]
        %v509 = vld [vmem:[%s498 + $0x28] sm:$0xf]
        %v510 = vld [vmem:[%s498 + $0x2c] sm:$0xf]
        %v511 = vld [vmem:[%s498 + $0x30] sm:$0xf]
        %v512 = vld [vmem:[%s498 + $0x34] sm:$0xf]
        %v513 = vld [vmem:[%s498 + $0x38] sm:$0xf]
        %v514 = vld [vmem:[%s498 + $0x3c] sm:$0xf]
        %v515 = vld [vmem:[%s498 + $0x40] sm:$0xf]
        %v516 = vld [vmem:[%s498 + $0x44] sm:$0xf]
        %v517 = vld [vmem:[%s498 + $0x48] sm:$0xf]
        %v518 = vld [vmem:[%s498 + $0x4c] sm:$0xf]
        %v519 = vld [vmem:[%s498 + $0x50] sm:$0xf]
        %v520 = vld [vmem:[%s498 + $0x54] sm:$0xf]
        %v521 = vld [vmem:[%s498 + $0x58] sm:$0xf]
        %v522 = vld [vmem:[%s498 + $0x5c] sm:$0xf]
        %v523 = vld [vmem:[%s498 + $0x60] sm:$0xf]
        %v524 = vld [vmem:[%s498 + $0x64] sm:$0xf]
        %v525 = vld [vmem:[%s498 + $0x68] sm:$0xf]
        %v526 = vld [vmem:[%s498 + $0x6c] sm:$0xf]
        %v527 = vld [vmem:[%s498 + $0x70] sm:$0xf]
        %v528 = vld [vmem:[%s498 + $0x74] sm:$0xf]
        %v529 = vld [vmem:[%s498 + $0x78] sm:$0xf]
        %v530 = vld [vmem:[%s498 + $0x7c] sm:$0xf]
        %v531 = vld [vmem:[%s498 + $0x80] sm:$0xf]
        %v532 = vld [vmem:[%s498 + $0x84] sm:$0xf]
        %v533 = vld [vmem:[%s498 + $0x88] sm:$0xf]
        %v534 = vld [vmem:[%s498 + $0x8c] sm:$0xf]
        %v535 = vld [vmem:[%s498 + $0x90] sm:$0xf]
        %v536 = vld [vmem:[%s498 + $0x94] sm:$0xf]
        %v537 = vld [vmem:[%s498 + $0x98] sm:$0xf]
        %v538 = vld [vmem:[%s498 + $0x9c] sm:$0xf]
        %v539 = vld [vmem:[%s498 + $0xa0] sm:$0xf]
        %v540 = vld [vmem:[%s498 + $0xa4] sm:$0xf]
        %v541 = vld [vmem:[%s498 + $0xa8] sm:$0xf]
        %v542 = vld [vmem:[%s498 + $0xac] sm:$0xf]
        %v543 = vld [vmem:[%s498 + $0xb0] sm:$0xf]
        %v544 = vld [vmem:[%s498 + $0xb4] sm:$0xf]
        %v545 = vld [vmem:[%s498 + $0xb8] sm:$0xf]
        %v546 = vld [vmem:[%s498 + $0xbc] sm:$0xf]
        %s547 = scalar_lea.vmem %s2, 1
        %v548 = vld [vmem:[%s547] sm:$0x1]
        %v550 = vlaneseq
        %v551 = vshrl.u32 %v550, 7
        %v552 = vsub.s32 0, %v551
        %v553 = vrot.slane %v548, %v552
        %v603 = vunpack.c.l.b16 %v499
        %v604 = vunpack.c.l.b16 %v500
        %v605 = vunpack.c.l.b16 %v501
        %v606 = vunpack.c.l.b16 %v502
        %v607 = vunpack.c.l.b16 %v503
        %v608 = vunpack.c.l.b16 %v504
        %v609 = vunpack.c.l.b16 %v505
        %v610 = vunpack.c.l.b16 %v506
        %v611 = vunpack.c.l.b16 %v507
        %v612 = vunpack.c.l.b16 %v508
        %v613 = vunpack.c.l.b16 %v509
        %v614 = vunpack.c.l.b16 %v510
        %v615 = vunpack.c.l.b16 %v511
        %v616 = vunpack.c.l.b16 %v512
        %v617 = vunpack.c.l.b16 %v513
        %v618 = vunpack.c.l.b16 %v514
        %v619 = vunpack.c.l.b16 %v515
        %v620 = vunpack.c.l.b16 %v516
        %v621 = vunpack.c.l.b16 %v517
        %v622 = vunpack.c.l.b16 %v518
        %v623 = vunpack.c.l.b16 %v519
        %v624 = vunpack.c.l.b16 %v520
        %v625 = vunpack.c.l.b16 %v521
        %v626 = vunpack.c.l.b16 %v522
        %v627 = vunpack.c.l.b16 %v523
        %v628 = vunpack.c.l.b16 %v524
        %v629 = vunpack.c.l.b16 %v525
        %v630 = vunpack.c.l.b16 %v526
        %v631 = vunpack.c.l.b16 %v527
        %v632 = vunpack.c.l.b16 %v528
        %v633 = vunpack.c.l.b16 %v529
        %v634 = vunpack.c.l.b16 %v530
        %v635 = vunpack.c.l.b16 %v531
        %v636 = vunpack.c.l.b16 %v532
        %v637 = vunpack.c.l.b16 %v533
        %v638 = vunpack.c.l.b16 %v534
        %v639 = vunpack.c.l.b16 %v535
        %v640 = vunpack.c.l.b16 %v536
        %v641 = vunpack.c.l.b16 %v537
        %v642 = vunpack.c.l.b16 %v538
        %v643 = vunpack.c.l.b16 %v539
        %v644 = vunpack.c.l.b16 %v540
        %v645 = vunpack.c.l.b16 %v541
        %v646 = vunpack.c.l.b16 %v542
        %v647 = vunpack.c.l.b16 %v543
        %v648 = vunpack.c.l.b16 %v544
        %v649 = vunpack.c.l.b16 %v545
        %v650 = vunpack.c.l.b16 %v546
        %v651 = vpack.c.b16 %v604, %v603
        %v652 = vpack.c.b16 %v606, %v605
        %v653 = vpack.c.b16 %v608, %v607
        %v654 = vpack.c.b16 %v610, %v609
        %v655 = vpack.c.b16 %v612, %v611
        %v656 = vpack.c.b16 %v614, %v613
        %v657 = vpack.c.b16 %v616, %v615
        %v658 = vpack.c.b16 %v618, %v617
        %v659 = vpack.c.b16 %v620, %v619
        %v660 = vpack.c.b16 %v622, %v621
        %v661 = vpack.c.b16 %v624, %v623
        %v662 = vpack.c.b16 %v626, %v625
        %v663 = vpack.c.b16 %v628, %v627
        %v664 = vpack.c.b16 %v630, %v629
        %v665 = vpack.c.b16 %v632, %v631
        %v666 = vpack.c.b16 %v634, %v633
        %v667 = vpack.c.b16 %v636, %v635
        %v668 = vpack.c.b16 %v638, %v637
        %v669 = vpack.c.b16 %v640, %v639
        %v670 = vpack.c.b16 %v642, %v641
        %v671 = vpack.c.b16 %v644, %v643
        %v672 = vpack.c.b16 %v646, %v645
        %v673 = vpack.c.b16 %v648, %v647
        %v674 = vpack.c.b16 %v650, %v649
        %699 = vmatprep.subr.bf16.mxu0 0
        %700 = vmatpush1.bf16.msra.mxu0 %v651
        %701 = vmatprep.subr.bf16.mxu0 0
        %702 = vmatpush1.bf16.msra.mxu0 %v652
        %703 = vmatprep.subr.bf16.mxu0 0
        %704 = vmatpush1.bf16.msra.mxu0 %v653
        %705 = vmatprep.subr.bf16.mxu0 0
        %706 = vmatpush1.bf16.msra.mxu0 %v654
        %707 = vmatprep.subr.bf16.mxu0 0
        %708 = vmatpush1.bf16.msra.mxu0 %v655
        %709 = vmatprep.subr.bf16.mxu0 0
        %710 = vmatpush1.bf16.msra.mxu0 %v656
        %711 = vmatprep.subr.bf16.mxu0 0
        %712 = vmatpush1.bf16.msra.mxu0 %v657
        %713 = vmatprep.subr.bf16.mxu0 0
        %714 = vmatpush1.bf16.msra.mxu0 %v658
        %715 = vmatprep.subr.bf16.mxu0 0
        %716 = vmatpush1.bf16.msra.mxu0 %v659
        %717 = vmatprep.subr.bf16.mxu0 0
        %718 = vmatpush1.bf16.msra.mxu0 %v660
        %719 = vmatprep.subr.bf16.mxu0 0
        %720 = vmatpush1.bf16.msra.mxu0 %v661
        %721 = vmatprep.subr.bf16.mxu0 0
        %722 = vmatpush1.bf16.msra.mxu0 %v662
        %723 = vmatprep.subr.bf16.mxu0 0
        %724 = vmatpush1.bf16.msra.mxu0 %v663
        %725 = vmatprep.subr.bf16.mxu0 0
        %726 = vmatpush1.bf16.msra.mxu0 %v664
        %727 = vmatprep.subr.bf16.mxu0 0
        %728 = vmatpush1.bf16.msra.mxu0 %v665
        %729 = vmatprep.subr.bf16.mxu0 0
        %730 = vmatpush1.bf16.msra.mxu0 %v666
        %731 = vmatprep.mubr.bf16.mxu0 %v496
        %732 = vmatmul.mubr.bf16.gmra.mrb[0].mxu0 %v495
        %v733 = vpop.f32.mrb[0].mxu0
        %v734 = vadd.f32 %v553, %v733
        %v735 = vpop.f32.mrb[0].mxu0
        %v736 = vpop.f32.mrb[0].mxu0
        %v737 = vadd.f32 %v553, %v736
        %v738 = vpop.f32.mrb[0].mxu0
        %739 = vdwg.mxu0
        %740 = vmatprep.subr.bf16.mxu0 0
        %741 = vmatpush1.bf16.msra.mxu0 %v667
        %742 = vmatprep.subr.bf16.mxu0 0
        %743 = vmatpush1.bf16.msra.mxu0 %v668
        %744 = vmatprep.subr.bf16.mxu0 0
        %745 = vmatpush1.bf16.msra.mxu0 %v669
        %746 = vmatprep.subr.bf16.mxu0 0
        %747 = vmatpush1.bf16.msra.mxu0 %v670
        %748 = vmatprep.subr.bf16.mxu0 0
        %749 = vmatpush1.bf16.msra.mxu0 %v671
        %750 = vmatprep.subr.bf16.mxu0 0
        %751 = vmatpush1.bf16.msra.mxu0 %v672
        %752 = vmatprep.subr.bf16.mxu0 0
        %753 = vmatpush1.bf16.msra.mxu0 %v673
        %754 = vmatprep.subr.bf16.mxu0 0
        %755 = vmatpush1.bf16.msra.mxu0 %v674
        %756 = vmatprep.subr.bf16.mxu0 0
        %757 = vmatpush1.bf16.msra.mxu0 0
        %758 = vmatprep.subr.bf16.mxu0 0
        %759 = vmatpush1.bf16.msra.mxu0 0
        %760 = vmatprep.subr.bf16.mxu0 0
        %761 = vmatpush1.bf16.msra.mxu0 0
        %762 = vmatprep.subr.bf16.mxu0 0
        %763 = vmatpush1.bf16.msra.mxu0 0
        %764 = vmatprep.subr.bf16.mxu0 0
        %765 = vmatpush1.bf16.msra.mxu0 0
        %766 = vmatprep.subr.bf16.mxu0 0
        %767 = vmatpush1.bf16.msra.mxu0 0
        %768 = vmatprep.subr.bf16.mxu0 0
        %769 = vmatpush1.bf16.msra.mxu0 0
        %770 = vmatprep.subr.bf16.mxu0 0
        %771 = vmatpush1.bf16.msra.mxu0 0
        %772 = vmatprep.mubr.bf16.mxu0 0
        %773 = vmatmul.mubr.bf16.gmra.mrb[0].mxu0 %v497
        %v774 = vpop.f32.mrb[0].mxu0
        %v775 = vadd.f32 %v734, %v774
        %v776 = vpop.f32.mrb[0].mxu0
        %v777 = vpop.f32.mrb[0].mxu0
        %v778 = vadd.f32 %v737, %v777
        %v779 = vpop.f32.mrb[0].mxu0
        %780 = vdwg.mxu0
        %v781 = vmax.f32 %v775, 0.0
        %v782 = vmax.f32 %v778, 0.0
        %783 = vst [vmem:[#allocation2 + $0x1] sm:$0xff] %v781
        %784 = vst [vmem:[#allocation2 + $0x9] sm:$0xff] %v782
        %v785 = vld [vmem:[#allocation2] sm:$0xff]
        %v786 = vld [vmem:[#allocation2 + $0x8] sm:$0xff]
        %v787 = vld [vmem:[#allocation2 + $0x1] sm:$0xff]
        %v788 = vld [vmem:[#allocation2 + $0x9] sm:$0xff]
        %v789 = vld [vmem:[#allocation2 + $0x2] sm:$0xff]
        %v790 = vld [vmem:[#allocation2 + $0xa] sm:$0xff]
        %v791 = vpack.c.bf16 %v786, %v785
        %v792 = vpack.c.bf16 %v788, %v787
        %v793 = vpack.c.bf16 %v790, %v789
        %s794 = scalar_lea.vmem [#allocation4], 384
        %v795 = vld [vmem:[%s794] sm:$0xf]
        %v796 = vld [vmem:[%s794 + $0x4] sm:$0xf]
        %v797 = vld [vmem:[%s794 + $0x8] sm:$0xf]
        %v798 = vld [vmem:[%s794 + $0xc] sm:$0xf]
        %v799 = vld [vmem:[%s794 + $0x10] sm:$0xf]
        %v800 = vld [vmem:[%s794 + $0x14] sm:$0xf]
        %v801 = vld [vmem:[%s794 + $0x18] sm:$0xf]
        %v802 = vld [vmem:[%s794 + $0x1c] sm:$0xf]
        %v803 = vld [vmem:[%s794 + $0x20] sm:$0xf]
        %v804 = vld [vmem:[%s794 + $0x24] sm:$0xf]
        %v805 = vld [vmem:[%s794 + $0x28] sm:$0xf]
        %v806 = vld [vmem:[%s794 + $0x2c] sm:$0xf]
        %v807 = vld [vmem:[%s794 + $0x30] sm:$0xf]
        %v808 = vld [vmem:[%s794 + $0x34] sm:$0xf]
        %v809 = vld [vmem:[%s794 + $0x38] sm:$0xf]
        %v810 = vld [vmem:[%s794 + $0x3c] sm:$0xf]
        %v811 = vld [vmem:[%s794 + $0x40] sm:$0xf]
        %v812 = vld [vmem:[%s794 + $0x44] sm:$0xf]
        %v813 = vld [vmem:[%s794 + $0x48] sm:$0xf]
        %v814 = vld [vmem:[%s794 + $0x4c] sm:$0xf]
        %v815 = vld [vmem:[%s794 + $0x50] sm:$0xf]
        %v816 = vld [vmem:[%s794 + $0x54] sm:$0xf]
        %v817 = vld [vmem:[%s794 + $0x58] sm:$0xf]
        %v818 = vld [vmem:[%s794 + $0x5c] sm:$0xf]
        %v819 = vld [vmem:[%s794 + $0x60] sm:$0xf]
        %v820 = vld [vmem:[%s794 + $0x64] sm:$0xf]
        %v821 = vld [vmem:[%s794 + $0x68] sm:$0xf]
        %v822 = vld [vmem:[%s794 + $0x6c] sm:$0xf]
        %v823 = vld [vmem:[%s794 + $0x70] sm:$0xf]
        %v824 = vld [vmem:[%s794 + $0x74] sm:$0xf]
        %v825 = vld [vmem:[%s794 + $0x78] sm:$0xf]
        %v826 = vld [vmem:[%s794 + $0x7c] sm:$0xf]
        %v827 = vld [vmem:[%s794 + $0x80] sm:$0xf]
        %v828 = vld [vmem:[%s794 + $0x84] sm:$0xf]
        %v829 = vld [vmem:[%s794 + $0x88] sm:$0xf]
        %v830 = vld [vmem:[%s794 + $0x8c] sm:$0xf]
        %v831 = vld [vmem:[%s794 + $0x90] sm:$0xf]
        %v832 = vld [vmem:[%s794 + $0x94] sm:$0xf]
        %v833 = vld [vmem:[%s794 + $0x98] sm:$0xf]
        %v834 = vld [vmem:[%s794 + $0x9c] sm:$0xf]
        %v835 = vld [vmem:[%s794 + $0xa0] sm:$0xf]
        %v836 = vld [vmem:[%s794 + $0xa4] sm:$0xf]
        %v837 = vld [vmem:[%s794 + $0xa8] sm:$0xf]
        %v838 = vld [vmem:[%s794 + $0xac] sm:$0xf]
        %v839 = vld [vmem:[%s794 + $0xb0] sm:$0xf]
        %v840 = vld [vmem:[%s794 + $0xb4] sm:$0xf]
        %v841 = vld [vmem:[%s794 + $0xb8] sm:$0xf]
        %v842 = vld [vmem:[%s794 + $0xbc] sm:$0xf]
        %s843 = scalar_lea.vmem %s2, 2
        %v844 = vld [vmem:[%s843] sm:$0x1]
        %v846 = vlaneseq
        %v847 = vshrl.u32 %v846, 7
        %v848 = vsub.s32 0, %v847
        %v849 = vrot.slane %v844, %v848
        %v899 = vunpack.c.l.b16 %v795
        %v900 = vunpack.c.l.b16 %v796
        %v901 = vunpack.c.l.b16 %v797
        %v902 = vunpack.c.l.b16 %v798
        %v903 = vunpack.c.l.b16 %v799
        %v904 = vunpack.c.l.b16 %v800
        %v905 = vunpack.c.l.b16 %v801
        %v906 = vunpack.c.l.b16 %v802
        %v907 = vunpack.c.l.b16 %v803
        %v908 = vunpack.c.l.b16 %v804
        %v909 = vunpack.c.l.b16 %v805
        %v910 = vunpack.c.l.b16 %v806
        %v911 = vunpack.c.l.b16 %v807
        %v912 = vunpack.c.l.b16 %v808
        %v913 = vunpack.c.l.b16 %v809
        %v914 = vunpack.c.l.b16 %v810
        %v915 = vunpack.c.l.b16 %v811
        %v916 = vunpack.c.l.b16 %v812
        %v917 = vunpack.c.l.b16 %v813
        %v918 = vunpack.c.l.b16 %v814
        %v919 = vunpack.c.l.b16 %v815
        %v920 = vunpack.c.l.b16 %v816
        %v921 = vunpack.c.l.b16 %v817
        %v922 = vunpack.c.l.b16 %v818
        %v923 = vunpack.c.l.b16 %v819
        %v924 = vunpack.c.l.b16 %v820
        %v925 = vunpack.c.l.b16 %v821
        %v926 = vunpack.c.l.b16 %v822
        %v927 = vunpack.c.l.b16 %v823
        %v928 = vunpack.c.l.b16 %v824
        %v929 = vunpack.c.l.b16 %v825
        %v930 = vunpack.c.l.b16 %v826
        %v931 = vunpack.c.l.b16 %v827
        %v932 = vunpack.c.l.b16 %v828
        %v933 = vunpack.c.l.b16 %v829
        %v934 = vunpack.c.l.b16 %v830
        %v935 = vunpack.c.l.b16 %v831
        %v936 = vunpack.c.l.b16 %v832
        %v937 = vunpack.c.l.b16 %v833
        %v938 = vunpack.c.l.b16 %v834
        %v939 = vunpack.c.l.b16 %v835
        %v940 = vunpack.c.l.b16 %v836
        %v941 = vunpack.c.l.b16 %v837
        %v942 = vunpack.c.l.b16 %v838
        %v943 = vunpack.c.l.b16 %v839
        %v944 = vunpack.c.l.b16 %v840
        %v945 = vunpack.c.l.b16 %v841
        %v946 = vunpack.c.l.b16 %v842
        %v947 = vpack.c.b16 %v900, %v899
        %v948 = vpack.c.b16 %v902, %v901
        %v949 = vpack.c.b16 %v904, %v903
        %v950 = vpack.c.b16 %v906, %v905
        %v951 = vpack.c.b16 %v908, %v907
        %v952 = vpack.c.b16 %v910, %v909
        %v953 = vpack.c.b16 %v912, %v911
        %v954 = vpack.c.b16 %v914, %v913
        %v955 = vpack.c.b16 %v916, %v915
        %v956 = vpack.c.b16 %v918, %v917
        %v957 = vpack.c.b16 %v920, %v919
        %v958 = vpack.c.b16 %v922, %v921
        %v959 = vpack.c.b16 %v924, %v923
        %v960 = vpack.c.b16 %v926, %v925
        %v961 = vpack.c.b16 %v928, %v927
        %v962 = vpack.c.b16 %v930, %v929
        %v963 = vpack.c.b16 %v932, %v931
        %v964 = vpack.c.b16 %v934, %v933
        %v965 = vpack.c.b16 %v936, %v935
        %v966 = vpack.c.b16 %v938, %v937
        %v967 = vpack.c.b16 %v940, %v939
        %v968 = vpack.c.b16 %v942, %v941
        %v969 = vpack.c.b16 %v944, %v943
        %v970 = vpack.c.b16 %v946, %v945
        %995 = vmatprep.subr.bf16.mxu0 0
        %996 = vmatpush1.bf16.msra.mxu0 %v947
        %997 = vmatprep.subr.bf16.mxu0 0
        %998 = vmatpush1.bf16.msra.mxu0 %v948
        %999 = vmatprep.subr.bf16.mxu0 0
        %1000 = vmatpush1.bf16.msra.mxu0 %v949
        %1001 = vmatprep.subr.bf16.mxu0 0
        %1002 = vmatpush1.bf16.msra.mxu0 %v950
        %1003 = vmatprep.subr.bf16.mxu0 0
        %1004 = vmatpush1.bf16.msra.mxu0 %v951
        %1005 = vmatprep.subr.bf16.mxu0 0
        %1006 = vmatpush1.bf16.msra.mxu0 %v952
        %1007 = vmatprep.subr.bf16.mxu0 0
        %1008 = vmatpush1.bf16.msra.mxu0 %v953
        %1009 = vmatprep.subr.bf16.mxu0 0
        %1010 = vmatpush1.bf16.msra.mxu0 %v954
        %1011 = vmatprep.subr.bf16.mxu0 0
        %1012 = vmatpush1.bf16.msra.mxu0 %v955
        %1013 = vmatprep.subr.bf16.mxu0 0
        %1014 = vmatpush1.bf16.msra.mxu0 %v956
        %1015 = vmatprep.subr.bf16.mxu0 0
        %1016 = vmatpush1.bf16.msra.mxu0 %v957
        %1017 = vmatprep.subr.bf16.mxu0 0
        %1018 = vmatpush1.bf16.msra.mxu0 %v958
        %1019 = vmatprep.subr.bf16.mxu0 0
        %1020 = vmatpush1.bf16.msra.mxu0 %v959
        %1021 = vmatprep.subr.bf16.mxu0 0
        %1022 = vmatpush1.bf16.msra.mxu0 %v960
        %1023 = vmatprep.subr.bf16.mxu0 0
        %1024 = vmatpush1.bf16.msra.mxu0 %v961
        %1025 = vmatprep.subr.bf16.mxu0 0
        %1026 = vmatpush1.bf16.msra.mxu0 %v962
        %1027 = vmatprep.mubr.bf16.mxu0 %v792
        %1028 = vmatmul.mubr.bf16.gmra.mrb[0].mxu0 %v791
        %v1029 = vpop.f32.mrb[0].mxu0
        %v1030 = vadd.f32 %v849, %v1029
        %v1031 = vpop.f32.mrb[0].mxu0
        %v1032 = vpop.f32.mrb[0].mxu0
        %v1033 = vadd.f32 %v849, %v1032
        %v1034 = vpop.f32.mrb[0].mxu0
        %1035 = vdwg.mxu0
        %1036 = vmatprep.subr.bf16.mxu0 0
        %1037 = vmatpush1.bf16.msra.mxu0 %v963
        %1038 = vmatprep.subr.bf16.mxu0 0
        %1039 = vmatpush1.bf16.msra.mxu0 %v964
        %1040 = vmatprep.subr.bf16.mxu0 0
        %1041 = vmatpush1.bf16.msra.mxu0 %v965
        %1042 = vmatprep.subr.bf16.mxu0 0
        %1043 = vmatpush1.bf16.msra.mxu0 %v966
        %1044 = vmatprep.subr.bf16.mxu0 0
        %1045 = vmatpush1.bf16.msra.mxu0 %v967
        %1046 = vmatprep.subr.bf16.mxu0 0
        %1047 = vmatpush1.bf16.msra.mxu0 %v968
        %1048 = vmatprep.subr.bf16.mxu0 0
        %1049 = vmatpush1.bf16.msra.mxu0 %v969
        %1050 = vmatprep.subr.bf16.mxu0 0
        %1051 = vmatpush1.bf16.msra.mxu0 %v970
        %1052 = vmatprep.subr.bf16.mxu0 0
        %1053 = vmatpush1.bf16.msra.mxu0 0
        %1054 = vmatprep.subr.bf16.mxu0 0
        %1055 = vmatpush1.bf16.msra.mxu0 0
        %1056 = vmatprep.subr.bf16.mxu0 0
        %1057 = vmatpush1.bf16.msra.mxu0 0
        %1058 = vmatprep.subr.bf16.mxu0 0
        %1059 = vmatpush1.bf16.msra.mxu0 0
        %1060 = vmatprep.subr.bf16.mxu0 0
        %1061 = vmatpush1.bf16.msra.mxu0 0
        %1062 = vmatprep.subr.bf16.mxu0 0
        %1063 = vmatpush1.bf16.msra.mxu0 0
        %1064 = vmatprep.subr.bf16.mxu0 0
        %1065 = vmatpush1.bf16.msra.mxu0 0
        %1066 = vmatprep.subr.bf16.mxu0 0
        %1067 = vmatpush1.bf16.msra.mxu0 0
        %1068 = vmatprep.mubr.bf16.mxu0 0
        %1069 = vmatmul.mubr.bf16.gmra.mrb[0].mxu0 %v793
        %v1070 = vpop.f32.mrb[0].mxu0
        %v1071 = vadd.f32 %v1030, %v1070
        %v1072 = vpop.f32.mrb[0].mxu0
        %v1073 = vpop.f32.mrb[0].mxu0
        %v1074 = vadd.f32 %v1033, %v1073
        %v1075 = vpop.f32.mrb[0].mxu0
        %1076 = vdwg.mxu0
        %v1077 = vld [vmem:[#allocation3] sm:$0xff]
        %v1078 = vld [vmem:[#allocation3 + $0x8] sm:$0xff]
        %v1079 = vadd.f32 %v1071, %v1077
        %v1080 = vadd.f32 %v1074, %v1078
        %v1081 = vmax.f32 %v1079, 0.0
        %v1082 = vmax.f32 %v1080, 0.0
        %1083 = vst [vmem:[#allocation2 + $0x1] sm:$0xff] %v1081
        %1084 = vst [vmem:[#allocation2 + $0x9] sm:$0xff] %v1082
        %v1085 = vld [vmem:[#allocation2] sm:$0xff]
        %v1086 = vld [vmem:[#allocation2 + $0x8] sm:$0xff]
        %v1087 = vld [vmem:[#allocation2 + $0x1] sm:$0xff]
        %v1088 = vld [vmem:[#allocation2 + $0x9] sm:$0xff]
        %v1089 = vld [vmem:[#allocation2 + $0x2] sm:$0xff]
        %v1090 = vld [vmem:[#allocation2 + $0xa] sm:$0xff]
        %v1091 = vpack.c.bf16 %v1086, %v1085
        %v1092 = vpack.c.bf16 %v1088, %v1087
        %v1093 = vpack.c.bf16 %v1090, %v1089
        %s1094 = scalar_lea.vmem [#allocation4], 576
        %v1095 = vld [vmem:[%s1094] sm:$0xf]
        %v1096 = vld [vmem:[%s1094 + $0x4] sm:$0xf]
        %v1097 = vld [vmem:[%s1094 + $0x8] sm:$0xf]
        %v1098 = vld [vmem:[%s1094 + $0xc] sm:$0xf]
        %v1099 = vld [vmem:[%s1094 + $0x10] sm:$0xf]
        %v1100 = vld [vmem:[%s1094 + $0x14] sm:$0xf]
        %v1101 = vld [vmem:[%s1094 + $0x18] sm:$0xf]
        %v1102 = vld [vmem:[%s1094 + $0x1c] sm:$0xf]
        %v1103 = vld [vmem:[%s1094 + $0x20] sm:$0xf]
        %v1104 = vld [vmem:[%s1094 + $0x24] sm:$0xf]
        %v1105 = vld [vmem:[%s1094 + $0x28] sm:$0xf]
        %v1106 = vld [vmem:[%s1094 + $0x2c] sm:$0xf]
        %v1107 = vld [vmem:[%s1094 + $0x30] sm:$0xf]
        %v1108 = vld [vmem:[%s1094 + $0x34] sm:$0xf]
        %v1109 = vld [vmem:[%s1094 + $0x38] sm:$0xf]
        %v1110 = vld [vmem:[%s1094 + $0x3c] sm:$0xf]
        %v1111 = vld [vmem:[%s1094 + $0x40] sm:$0xf]
        %v1112 = vld [vmem:[%s1094 + $0x44] sm:$0xf]
        %v1113 = vld [vmem:[%s1094 + $0x48] sm:$0xf]
        %v1114 = vld [vmem:[%s1094 + $0x4c] sm:$0xf]
        %v1115 = vld [vmem:[%s1094 + $0x50] sm:$0xf]
        %v1116 = vld [vmem:[%s1094 + $0x54] sm:$0xf]
        %v1117 = vld [vmem:[%s1094 + $0x58] sm:$0xf]
        %v1118 = vld [vmem:[%s1094 + $0x5c] sm:$0xf]
        %v1119 = vld [vmem:[%s1094 + $0x60] sm:$0xf]
        %v1120 = vld [vmem:[%s1094 + $0x64] sm:$0xf]
        %v1121 = vld [vmem:[%s1094 + $0x68] sm:$0xf]
        %v1122 = vld [vmem:[%s1094 + $0x6c] sm:$0xf]
        %v1123 = vld [vmem:[%s1094 + $0x70] sm:$0xf]
        %v1124 = vld [vmem:[%s1094 + $0x74] sm:$0xf]
        %v1125 = vld [vmem:[%s1094 + $0x78] sm:$0xf]
        %v1126 = vld [vmem:[%s1094 + $0x7c] sm:$0xf]
        %v1127 = vld [vmem:[%s1094 + $0x80] sm:$0xf]
        %v1128 = vld [vmem:[%s1094 + $0x84] sm:$0xf]
        %v1129 = vld [vmem:[%s1094 + $0x88] sm:$0xf]
        %v1130 = vld [vmem:[%s1094 + $0x8c] sm:$0xf]
        %v1131 = vld [vmem:[%s1094 + $0x90] sm:$0xf]
        %v1132 = vld [vmem:[%s1094 + $0x94] sm:$0xf]
        %v1133 = vld [vmem:[%s1094 + $0x98] sm:$0xf]
        %v1134 = vld [vmem:[%s1094 + $0x9c] sm:$0xf]
        %v1135 = vld [vmem:[%s1094 + $0xa0] sm:$0xf]
        %v1136 = vld [vmem:[%s1094 + $0xa4] sm:$0xf]
        %v1137 = vld [vmem:[%s1094 + $0xa8] sm:$0xf]
        %v1138 = vld [vmem:[%s1094 + $0xac] sm:$0xf]
        %v1139 = vld [vmem:[%s1094 + $0xb0] sm:$0xf]
        %v1140 = vld [vmem:[%s1094 + $0xb4] sm:$0xf]
        %v1141 = vld [vmem:[%s1094 + $0xb8] sm:$0xf]
        %v1142 = vld [vmem:[%s1094 + $0xbc] sm:$0xf]
        %s1143 = scalar_lea.vmem %s2, 3
        %v1144 = vld [vmem:[%s1143] sm:$0x1]
        %v1146 = vlaneseq
        %v1147 = vshrl.u32 %v1146, 7
        %v1148 = vsub.s32 0, %v1147
        %v1149 = vrot.slane %v1144, %v1148
        %v1199 = vunpack.c.l.b16 %v1095
        %v1200 = vunpack.c.l.b16 %v1096
        %v1201 = vunpack.c.l.b16 %v1097
        %v1202 = vunpack.c.l.b16 %v1098
        %v1203 = vunpack.c.l.b16 %v1099
        %v1204 = vunpack.c.l.b16 %v1100
        %v1205 = vunpack.c.l.b16 %v1101
        %v1206 = vunpack.c.l.b16 %v1102
        %v1207 = vunpack.c.l.b16 %v1103
        %v1208 = vunpack.c.l.b16 %v1104
        %v1209 = vunpack.c.l.b16 %v1105
        %v1210 = vunpack.c.l.b16 %v1106
        %v1211 = vunpack.c.l.b16 %v1107
        %v1212 = vunpack.c.l.b16 %v1108
        %v1213 = vunpack.c.l.b16 %v1109
        %v1214 = vunpack.c.l.b16 %v1110
        %v1215 = vunpack.c.l.b16 %v1111
        %v1216 = vunpack.c.l.b16 %v1112
        %v1217 = vunpack.c.l.b16 %v1113
        %v1218 = vunpack.c.l.b16 %v1114
        %v1219 = vunpack.c.l.b16 %v1115
        %v1220 = vunpack.c.l.b16 %v1116
        %v1221 = vunpack.c.l.b16 %v1117
        %v1222 = vunpack.c.l.b16 %v1118
        %v1223 = vunpack.c.l.b16 %v1119
        %v1224 = vunpack.c.l.b16 %v1120
        %v1225 = vunpack.c.l.b16 %v1121
        %v1226 = vunpack.c.l.b16 %v1122
        %v1227 = vunpack.c.l.b16 %v1123
        %v1228 = vunpack.c.l.b16 %v1124
        %v1229 = vunpack.c.l.b16 %v1125
        %v1230 = vunpack.c.l.b16 %v1126
        %v1231 = vunpack.c.l.b16 %v1127
        %v1232 = vunpack.c.l.b16 %v1128
        %v1233 = vunpack.c.l.b16 %v1129
        %v1234 = vunpack.c.l.b16 %v1130
        %v1235 = vunpack.c.l.b16 %v1131
        %v1236 = vunpack.c.l.b16 %v1132
        %v1237 = vunpack.c.l.b16 %v1133
        %v1238 = vunpack.c.l.b16 %v1134
        %v1239 = vunpack.c.l.b16 %v1135
        %v1240 = vunpack.c.l.b16 %v1136
        %v1241 = vunpack.c.l.b16 %v1137
        %v1242 = vunpack.c.l.b16 %v1138
        %v1243 = vunpack.c.l.b16 %v1139
        %v1244 = vunpack.c.l.b16 %v1140
        %v1245 = vunpack.c.l.b16 %v1141
        %v1246 = vunpack.c.l.b16 %v1142
        %v1247 = vpack.c.b16 %v1200, %v1199
        %v1248 = vpack.c.b16 %v1202, %v1201
        %v1249 = vpack.c.b16 %v1204, %v1203
        %v1250 = vpack.c.b16 %v1206, %v1205
        %v1251 = vpack.c.b16 %v1208, %v1207
        %v1252 = vpack.c.b16 %v1210, %v1209
        %v1253 = vpack.c.b16 %v1212, %v1211
        %v1254 = vpack.c.b16 %v1214, %v1213
        %v1255 = vpack.c.b16 %v1216, %v1215
        %v1256 = vpack.c.b16 %v1218, %v1217
        %v1257 = vpack.c.b16 %v1220, %v1219
        %v1258 = vpack.c.b16 %v1222, %v1221
        %v1259 = vpack.c.b16 %v1224, %v1223
        %v1260 = vpack.c.b16 %v1226, %v1225
        %v1261 = vpack.c.b16 %v1228, %v1227
        %v1262 = vpack.c.b16 %v1230, %v1229
        %v1263 = vpack.c.b16 %v1232, %v1231
        %v1264 = vpack.c.b16 %v1234, %v1233
        %v1265 = vpack.c.b16 %v1236, %v1235
        %v1266 = vpack.c.b16 %v1238, %v1237
        %v1267 = vpack.c.b16 %v1240, %v1239
        %v1268 = vpack.c.b16 %v1242, %v1241
        %v1269 = vpack.c.b16 %v1244, %v1243
        %v1270 = vpack.c.b16 %v1246, %v1245
        %1295 = vmatprep.subr.bf16.mxu0 0
        %1296 = vmatpush1.bf16.msra.mxu0 %v1247
        %1297 = vmatprep.subr.bf16.mxu0 0
        %1298 = vmatpush1.bf16.msra.mxu0 %v1248
        %1299 = vmatprep.subr.bf16.mxu0 0
        %1300 = vmatpush1.bf16.msra.mxu0 %v1249
        %1301 = vmatprep.subr.bf16.mxu0 0
        %1302 = vmatpush1.bf16.msra.mxu0 %v1250
        %1303 = vmatprep.subr.bf16.mxu0 0
        %1304 = vmatpush1.bf16.msra.mxu0 %v1251
        %1305 = vmatprep.subr.bf16.mxu0 0
        %1306 = vmatpush1.bf16.msra.mxu0 %v1252
        %1307 = vmatprep.subr.bf16.mxu0 0
        %1308 = vmatpush1.bf16.msra.mxu0 %v1253
        %1309 = vmatprep.subr.bf16.mxu0 0
        %1310 = vmatpush1.bf16.msra.mxu0 %v1254
        %1311 = vmatprep.subr.bf16.mxu0 0
        %1312 = vmatpush1.bf16.msra.mxu0 %v1255
        %1313 = vmatprep.subr.bf16.mxu0 0
        %1314 = vmatpush1.bf16.msra.mxu0 %v1256
        %1315 = vmatprep.subr.bf16.mxu0 0
        %1316 = vmatpush1.bf16.msra.mxu0 %v1257
        %1317 = vmatprep.subr.bf16.mxu0 0
        %1318 = vmatpush1.bf16.msra.mxu0 %v1258
        %1319 = vmatprep.subr.bf16.mxu0 0
        %1320 = vmatpush1.bf16.msra.mxu0 %v1259
        %1321 = vmatprep.subr.bf16.mxu0 0
        %1322 = vmatpush1.bf16.msra.mxu0 %v1260
        %1323 = vmatprep.subr.bf16.mxu0 0
        %1324 = vmatpush1.bf16.msra.mxu0 %v1261
        %1325 = vmatprep.subr.bf16.mxu0 0
        %1326 = vmatpush1.bf16.msra.mxu0 %v1262
        %1327 = vmatprep.mubr.bf16.mxu0 %v1092
        %1328 = vmatmul.mubr.bf16.gmra.mrb[0].mxu0 %v1091
        %v1329 = vpop.f32.mrb[0].mxu0
        %v1330 = vadd.f32 %v1149, %v1329
        %v1331 = vpop.f32.mrb[0].mxu0
        %v1332 = vpop.f32.mrb[0].mxu0
        %v1333 = vadd.f32 %v1149, %v1332
        %v1334 = vpop.f32.mrb[0].mxu0
        %1335 = vdwg.mxu0
        %1336 = vmatprep.subr.bf16.mxu0 0
        %1337 = vmatpush1.bf16.msra.mxu0 %v1263
        %1338 = vmatprep.subr.bf16.mxu0 0
        %1339 = vmatpush1.bf16.msra.mxu0 %v1264
        %1340 = vmatprep.subr.bf16.mxu0 0
        %1341 = vmatpush1.bf16.msra.mxu0 %v1265
        %1342 = vmatprep.subr.bf16.mxu0 0
        %1343 = vmatpush1.bf16.msra.mxu0 %v1266
        %1344 = vmatprep.subr.bf16.mxu0 0
        %1345 = vmatpush1.bf16.msra.mxu0 %v1267
        %1346 = vmatprep.subr.bf16.mxu0 0
        %1347 = vmatpush1.bf16.msra.mxu0 %v1268
        %1348 = vmatprep.subr.bf16.mxu0 0
        %1349 = vmatpush1.bf16.msra.mxu0 %v1269
        %1350 = vmatprep.subr.bf16.mxu0 0
        %1351 = vmatpush1.bf16.msra.mxu0 %v1270
        %1352 = vmatprep.subr.bf16.mxu0 0
        %1353 = vmatpush1.bf16.msra.mxu0 0
        %1354 = vmatprep.subr.bf16.mxu0 0
        %1355 = vmatpush1.bf16.msra.mxu0 0
        %1356 = vmatprep.subr.bf16.mxu0 0
        %1357 = vmatpush1.bf16.msra.mxu0 0
        %1358 = vmatprep.subr.bf16.mxu0 0
        %1359 = vmatpush1.bf16.msra.mxu0 0
        %1360 = vmatprep.subr.bf16.mxu0 0
        %1361 = vmatpush1.bf16.msra.mxu0 0
        %1362 = vmatprep.subr.bf16.mxu0 0
        %1363 = vmatpush1.bf16.msra.mxu0 0
        %1364 = vmatprep.subr.bf16.mxu0 0
        %1365 = vmatpush1.bf16.msra.mxu0 0
        %1366 = vmatprep.subr.bf16.mxu0 0
        %1367 = vmatpush1.bf16.msra.mxu0 0
        %1368 = vmatprep.mubr.bf16.mxu0 0
        %1369 = vmatmul.mubr.bf16.gmra.mrb[0].mxu0 %v1093
        %v1370 = vpop.f32.mrb[0].mxu0
        %v1371 = vadd.f32 %v1330, %v1370
        %v1372 = vpop.f32.mrb[0].mxu0
        %v1373 = vpop.f32.mrb[0].mxu0
        %v1374 = vadd.f32 %v1333, %v1373
        %v1375 = vpop.f32.mrb[0].mxu0
        %1376 = vdwg.mxu0
        %v1377 = vmax.f32 %v1371, 0.0
        %v1378 = vmax.f32 %v1374, 0.0
        %1379 = vst [vmem:[#allocation2 + $0x1] sm:$0xff] %v1377
        %1380 = vst [vmem:[#allocation2 + $0x9] sm:$0xff] %v1378
        %v1381 = vld [vmem:[#allocation2] sm:$0xff]
        %v1382 = vld [vmem:[#allocation2 + $0x8] sm:$0xff]
        %v1383 = vld [vmem:[#allocation2 + $0x1] sm:$0xff]
        %v1384 = vld [vmem:[#allocation2 + $0x9] sm:$0xff]
        %v1385 = vld [vmem:[#allocation2 + $0x2] sm:$0xff]
        %v1386 = vld [vmem:[#allocation2 + $0xa] sm:$0xff]
        %v1387 = vpack.c.bf16 %v1382, %v1381
        %v1388 = vpack.c.bf16 %v1384, %v1383
        %v1389 = vpack.c.bf16 %v1386, %v1385
        %s1390 = scalar_lea.vmem [#allocation4], 768
        %v1391 = vld [vmem:[%s1390] sm:$0xf]
        %v1392 = vld [vmem:[%s1390 + $0x4] sm:$0xf]
        %v1393 = vld [vmem:[%s1390 + $0x8] sm:$0xf]
        %v1394 = vld [vmem:[%s1390 + $0xc] sm:$0xf]
        %v1395 = vld [vmem:[%s1390 + $0x10] sm:$0xf]
        %v1396 = vld [vmem:[%s1390 + $0x14] sm:$0xf]
        %v1397 = vld [vmem:[%s1390 + $0x18] sm:$0xf]
        %v1398 = vld [vmem:[%s1390 + $0x1c] sm:$0xf]
        %v1399 = vld [vmem:[%s1390 + $0x20] sm:$0xf]
        %v1400 = vld [vmem:[%s1390 + $0x24] sm:$0xf]
        %v1401 = vld [vmem:[%s1390 + $0x28] sm:$0xf]
        %v1402 = vld [vmem:[%s1390 + $0x2c] sm:$0xf]
        %v1403 = vld [vmem:[%s1390 + $0x30] sm:$0xf]
        %v1404 = vld [vmem:[%s1390 + $0x34] sm:$0xf]
        %v1405 = vld [vmem:[%s1390 + $0x38] sm:$0xf]
        %v1406 = vld [vmem:[%s1390 + $0x3c] sm:$0xf]
        %v1407 = vld [vmem:[%s1390 + $0x40] sm:$0xf]
        %v1408 = vld [vmem:[%s1390 + $0x44] sm:$0xf]
        %v1409 = vld [vmem:[%s1390 + $0x48] sm:$0xf]
        %v1410 = vld [vmem:[%s1390 + $0x4c] sm:$0xf]
        %v1411 = vld [vmem:[%s1390 + $0x50] sm:$0xf]
        %v1412 = vld [vmem:[%s1390 + $0x54] sm:$0xf]
        %v1413 = vld [vmem:[%s1390 + $0x58] sm:$0xf]
        %v1414 = vld [vmem:[%s1390 + $0x5c] sm:$0xf]
        %v1415 = vld [vmem:[%s1390 + $0x60] sm:$0xf]
        %v1416 = vld [vmem:[%s1390 + $0x64] sm:$0xf]
        %v1417 = vld [vmem:[%s1390 + $0x68] sm:$0xf]
        %v1418 = vld [vmem:[%s1390 + $0x6c] sm:$0xf]
        %v1419 = vld [vmem:[%s1390 + $0x70] sm:$0xf]
        %v1420 = vld [vmem:[%s1390 + $0x74] sm:$0xf]
        %v1421 = vld [vmem:[%s1390 + $0x78] sm:$0xf]
        %v1422 = vld [vmem:[%s1390 + $0x7c] sm:$0xf]
        %v1423 = vld [vmem:[%s1390 + $0x80] sm:$0xf]
        %v1424 = vld [vmem:[%s1390 + $0x84] sm:$0xf]
        %v1425 = vld [vmem:[%s1390 + $0x88] sm:$0xf]
        %v1426 = vld [vmem:[%s1390 + $0x8c] sm:$0xf]
        %v1427 = vld [vmem:[%s1390 + $0x90] sm:$0xf]
        %v1428 = vld [vmem:[%s1390 + $0x94] sm:$0xf]
        %v1429 = vld [vmem:[%s1390 + $0x98] sm:$0xf]
        %v1430 = vld [vmem:[%s1390 + $0x9c] sm:$0xf]
        %v1431 = vld [vmem:[%s1390 + $0xa0] sm:$0xf]
        %v1432 = vld [vmem:[%s1390 + $0xa4] sm:$0xf]
        %v1433 = vld [vmem:[%s1390 + $0xa8] sm:$0xf]
        %v1434 = vld [vmem:[%s1390 + $0xac] sm:$0xf]
        %v1435 = vld [vmem:[%s1390 + $0xb0] sm:$0xf]
        %v1436 = vld [vmem:[%s1390 + $0xb4] sm:$0xf]
        %v1437 = vld [vmem:[%s1390 + $0xb8] sm:$0xf]
        %v1438 = vld [vmem:[%s1390 + $0xbc] sm:$0xf]
        %s1439 = scalar_lea.vmem %s2, 4
        %v1440 = vld [vmem:[%s1439] sm:$0x1]
        %v1442 = vlaneseq
        %v1443 = vshrl.u32 %v1442, 7
        %v1444 = vsub.s32 0, %v1443
        %v1445 = vrot.slane %v1440, %v1444
        %v1495 = vunpack.c.l.b16 %v1391
        %v1496 = vunpack.c.l.b16 %v1392
        %v1497 = vunpack.c.l.b16 %v1393
        %v1498 = vunpack.c.l.b16 %v1394
        %v1499 = vunpack.c.l.b16 %v1395
        %v1500 = vunpack.c.l.b16 %v1396
        %v1501 = vunpack.c.l.b16 %v1397
        %v1502 = vunpack.c.l.b16 %v1398
        %v1503 = vunpack.c.l.b16 %v1399
        %v1504 = vunpack.c.l.b16 %v1400
        %v1505 = vunpack.c.l.b16 %v1401
        %v1506 = vunpack.c.l.b16 %v1402
        %v1507 = vunpack.c.l.b16 %v1403
        %v1508 = vunpack.c.l.b16 %v1404
        %v1509 = vunpack.c.l.b16 %v1405
        %v1510 = vunpack.c.l.b16 %v1406
        %v1511 = vunpack.c.l.b16 %v1407
        %v1512 = vunpack.c.l.b16 %v1408
        %v1513 = vunpack.c.l.b16 %v1409
        %v1514 = vunpack.c.l.b16 %v1410
        %v1515 = vunpack.c.l.b16 %v1411
        %v1516 = vunpack.c.l.b16 %v1412
        %v1517 = vunpack.c.l.b16 %v1413
        %v1518 = vunpack.c.l.b16 %v1414
        %v1519 = vunpack.c.l.b16 %v1415
        %v1520 = vunpack.c.l.b16 %v1416
        %v1521 = vunpack.c.l.b16 %v1417
        %v1522 = vunpack.c.l.b16 %v1418
        %v1523 = vunpack.c.l.b16 %v1419
        %v1524 = vunpack.c.l.b16 %v1420
        %v1525 = vunpack.c.l.b16 %v1421
        %v1526 = vunpack.c.l.b16 %v1422
        %v1527 = vunpack.c.l.b16 %v1423
        %v1528 = vunpack.c.l.b16 %v1424
        %v1529 = vunpack.c.l.b16 %v1425
        %v1530 = vunpack.c.l.b16 %v1426
        %v1531 = vunpack.c.l.b16 %v1427
        %v1532 = vunpack.c.l.b16 %v1428
        %v1533 = vunpack.c.l.b16 %v1429
        %v1534 = vunpack.c.l.b16 %v1430
        %v1535 = vunpack.c.l.b16 %v1431
        %v1536 = vunpack.c.l.b16 %v1432
        %v1537 = vunpack.c.l.b16 %v1433
        %v1538 = vunpack.c.l.b16 %v1434
        %v1539 = vunpack.c.l.b16 %v1435
        %v1540 = vunpack.c.l.b16 %v1436
        %v1541 = vunpack.c.l.b16 %v1437
        %v1542 = vunpack.c.l.b16 %v1438
        %v1543 = vpack.c.b16 %v1496, %v1495
        %v1544 = vpack.c.b16 %v1498, %v1497
        %v1545 = vpack.c.b16 %v1500, %v1499
        %v1546 = vpack.c.b16 %v1502, %v1501
        %v1547 = vpack.c.b16 %v1504, %v1503
        %v1548 = vpack.c.b16 %v1506, %v1505
        %v1549 = vpack.c.b16 %v1508, %v1507
        %v1550 = vpack.c.b16 %v1510, %v1509
        %v1551 = vpack.c.b16 %v1512, %v1511
        %v1552 = vpack.c.b16 %v1514, %v1513
        %v1553 = vpack.c.b16 %v1516, %v1515
        %v1554 = vpack.c.b16 %v1518, %v1517
        %v1555 = vpack.c.b16 %v1520, %v1519
        %v1556 = vpack.c.b16 %v1522, %v1521
        %v1557 = vpack.c.b16 %v1524, %v1523
        %v1558 = vpack.c.b16 %v1526, %v1525
        %v1559 = vpack.c.b16 %v1528, %v1527
        %v1560 = vpack.c.b16 %v1530, %v1529
        %v1561 = vpack.c.b16 %v1532, %v1531
        %v1562 = vpack.c.b16 %v1534, %v1533
        %v1563 = vpack.c.b16 %v1536, %v1535
        %v1564 = vpack.c.b16 %v1538, %v1537
        %v1565 = vpack.c.b16 %v1540, %v1539
        %v1566 = vpack.c.b16 %v1542, %v1541
        %1591 = vmatprep.subr.bf16.mxu0 0
        %1592 = vmatpush1.bf16.msra.mxu0 %v1543
        %1593 = vmatprep.subr.bf16.mxu0 0
        %1594 = vmatpush1.bf16.msra.mxu0 %v1544
        %1595 = vmatprep.subr.bf16.mxu0 0
        %1596 = vmatpush1.bf16.msra.mxu0 %v1545
        %1597 = vmatprep.subr.bf16.mxu0 0
        %1598 = vmatpush1.bf16.msra.mxu0 %v1546
        %1599 = vmatprep.subr.bf16.mxu0 0
        %1600 = vmatpush1.bf16.msra.mxu0 %v1547
        %1601 = vmatprep.subr.bf16.mxu0 0
        %1602 = vmatpush1.bf16.msra.mxu0 %v1548
        %1603 = vmatprep.subr.bf16.mxu0 0
        %1604 = vmatpush1.bf16.msra.mxu0 %v1549
        %1605 = vmatprep.subr.bf16.mxu0 0
        %1606 = vmatpush1.bf16.msra.mxu0 %v1550
        %1607 = vmatprep.subr.bf16.mxu0 0
        %1608 = vmatpush1.bf16.msra.mxu0 %v1551
        %1609 = vmatprep.subr.bf16.mxu0 0
        %1610 = vmatpush1.bf16.msra.mxu0 %v1552
        %1611 = vmatprep.subr.bf16.mxu0 0
        %1612 = vmatpush1.bf16.msra.mxu0 %v1553
        %1613 = vmatprep.subr.bf16.mxu0 0
        %1614 = vmatpush1.bf16.msra.mxu0 %v1554
        %1615 = vmatprep.subr.bf16.mxu0 0
        %1616 = vmatpush1.bf16.msra.mxu0 %v1555
        %1617 = vmatprep.subr.bf16.mxu0 0
        %1618 = vmatpush1.bf16.msra.mxu0 %v1556
        %1619 = vmatprep.subr.bf16.mxu0 0
        %1620 = vmatpush1.bf16.msra.mxu0 %v1557
        %1621 = vmatprep.subr.bf16.mxu0 0
        %1622 = vmatpush1.bf16.msra.mxu0 %v1558
        %1623 = vmatprep.mubr.bf16.mxu0 %v1388
        %1624 = vmatmul.mubr.bf16.gmra.mrb[0].mxu0 %v1387
        %v1625 = vpop.f32.mrb[0].mxu0
        %v1626 = vadd.f32 %v1445, %v1625
        %v1627 = vpop.f32.mrb[0].mxu0
        %v1628 = vpop.f32.mrb[0].mxu0
        %v1629 = vadd.f32 %v1445, %v1628
        %v1630 = vpop.f32.mrb[0].mxu0
        %1631 = vdwg.mxu0
        %1632 = vmatprep.subr.bf16.mxu0 0
        %1633 = vmatpush1.bf16.msra.mxu0 %v1559
        %1634 = vmatprep.subr.bf16.mxu0 0
        %1635 = vmatpush1.bf16.msra.mxu0 %v1560
        %1636 = vmatprep.subr.bf16.mxu0 0
        %1637 = vmatpush1.bf16.msra.mxu0 %v1561
        %1638 = vmatprep.subr.bf16.mxu0 0
        %1639 = vmatpush1.bf16.msra.mxu0 %v1562
        %1640 = vmatprep.subr.bf16.mxu0 0
        %1641 = vmatpush1.bf16.msra.mxu0 %v1563
        %1642 = vmatprep.subr.bf16.mxu0 0
        %1643 = vmatpush1.bf16.msra.mxu0 %v1564
        %1644 = vmatprep.subr.bf16.mxu0 0
        %1645 = vmatpush1.bf16.msra.mxu0 %v1565
        %1646 = vmatprep.subr.bf16.mxu0 0
        %1647 = vmatpush1.bf16.msra.mxu0 %v1566
        %1648 = vmatprep.subr.bf16.mxu0 0
        %1649 = vmatpush1.bf16.msra.mxu0 0
        %1650 = vmatprep.subr.bf16.mxu0 0
        %1651 = vmatpush1.bf16.msra.mxu0 0
        %1652 = vmatprep.subr.bf16.mxu0 0
        %1653 = vmatpush1.bf16.msra.mxu0 0
        %1654 = vmatprep.subr.bf16.mxu0 0
        %1655 = vmatpush1.bf16.msra.mxu0 0
        %1656 = vmatprep.subr.bf16.mxu0 0
        %1657 = vmatpush1.bf16.msra.mxu0 0
        %1658 = vmatprep.subr.bf16.mxu0 0
        %1659 = vmatpush1.bf16.msra.mxu0 0
        %1660 = vmatprep.subr.bf16.mxu0 0
        %1661 = vmatpush1.bf16.msra.mxu0 0
        %1662 = vmatprep.subr.bf16.mxu0 0
        %1663 = vmatpush1.bf16.msra.mxu0 0
        %1664 = vmatprep.mubr.bf16.mxu0 0
        %1665 = vmatmul.mubr.bf16.gmra.mrb[0].mxu0 %v1389
        %v1666 = vpop.f32.mrb[0].mxu0
        %v1667 = vadd.f32 %v1626, %v1666
        %v1668 = vpop.f32.mrb[0].mxu0
        %v1669 = vpop.f32.mrb[0].mxu0
        %v1670 = vadd.f32 %v1629, %v1669
        %v1671 = vpop.f32.mrb[0].mxu0
        %1672 = vdwg.mxu0
        %v1673 = vmax.f32 %v1667, 0.0
        %v1674 = vmax.f32 %v1670, 0.0
        %1675 = vst [vmem:[#allocation3] sm:$0xff] %v1673
        %1676 = vst [vmem:[#allocation3 + $0x8] sm:$0xff] %v1674
        %1677 = vst [vmem:[#allocation2 + $0x1] sm:$0xff] %v1673
        %1678 = vst [vmem:[#allocation2 + $0x9] sm:$0xff] %v1674
        %v1679 = vld [vmem:[#allocation2] sm:$0xff]
        %v1680 = vld [vmem:[#allocation2 + $0x8] sm:$0xff]
        %v1681 = vld [vmem:[#allocation2 + $0x1] sm:$0xff]
        %v1682 = vld [vmem:[#allocation2 + $0x9] sm:$0xff]
        %v1683 = vld [vmem:[#allocation2 + $0x2] sm:$0xff]
        %v1684 = vld [vmem:[#allocation2 + $0xa] sm:$0xff]
        %v1685 = vpack.c.bf16 %v1680, %v1679
        %v1686 = vpack.c.bf16 %v1682, %v1681
        %v1687 = vpack.c.bf16 %v1684, %v1683
        %s1688 = scalar_lea.vmem [#allocation4], 960
        %v1689 = vld [vmem:[%s1688] sm:$0xf]
        %v1690 = vld [vmem:[%s1688 + $0x4] sm:$0xf]
        %v1691 = vld [vmem:[%s1688 + $0x8] sm:$0xf]
        %v1692 = vld [vmem:[%s1688 + $0xc] sm:$0xf]
        %v1693 = vld [vmem:[%s1688 + $0x10] sm:$0xf]
        %v1694 = vld [vmem:[%s1688 + $0x14] sm:$0xf]
        %v1695 = vld [vmem:[%s1688 + $0x18] sm:$0xf]
        %v1696 = vld [vmem:[%s1688 + $0x1c] sm:$0xf]
        %v1697 = vld [vmem:[%s1688 + $0x20] sm:$0xf]
        %v1698 = vld [vmem:[%s1688 + $0x24] sm:$0xf]
        %v1699 = vld [vmem:[%s1688 + $0x28] sm:$0xf]
        %v1700 = vld [vmem:[%s1688 + $0x2c] sm:$0xf]
        %v1701 = vld [vmem:[%s1688 + $0x30] sm:$0xf]
        %v1702 = vld [vmem:[%s1688 + $0x34] sm:$0xf]
        %v1703 = vld [vmem:[%s1688 + $0x38] sm:$0xf]
        %v1704 = vld [vmem:[%s1688 + $0x3c] sm:$0xf]
        %v1705 = vld [vmem:[%s1688 + $0x40] sm:$0xf]
        %v1706 = vld [vmem:[%s1688 + $0x44] sm:$0xf]
        %v1707 = vld [vmem:[%s1688 + $0x48] sm:$0xf]
        %v1708 = vld [vmem:[%s1688 + $0x4c] sm:$0xf]
        %v1709 = vld [vmem:[%s1688 + $0x50] sm:$0xf]
        %v1710 = vld [vmem:[%s1688 + $0x54] sm:$0xf]
        %v1711 = vld [vmem:[%s1688 + $0x58] sm:$0xf]
        %v1712 = vld [vmem:[%s1688 + $0x5c] sm:$0xf]
        %v1713 = vld [vmem:[%s1688 + $0x60] sm:$0xf]
        %v1714 = vld [vmem:[%s1688 + $0x64] sm:$0xf]
        %v1715 = vld [vmem:[%s1688 + $0x68] sm:$0xf]
        %v1716 = vld [vmem:[%s1688 + $0x6c] sm:$0xf]
        %v1717 = vld [vmem:[%s1688 + $0x70] sm:$0xf]
        %v1718 = vld [vmem:[%s1688 + $0x74] sm:$0xf]
        %v1719 = vld [vmem:[%s1688 + $0x78] sm:$0xf]
        %v1720 = vld [vmem:[%s1688 + $0x7c] sm:$0xf]
        %v1721 = vld [vmem:[%s1688 + $0x80] sm:$0xf]
        %v1722 = vld [vmem:[%s1688 + $0x84] sm:$0xf]
        %v1723 = vld [vmem:[%s1688 + $0x88] sm:$0xf]
        %v1724 = vld [vmem:[%s1688 + $0x8c] sm:$0xf]
        %v1725 = vld [vmem:[%s1688 + $0x90] sm:$0xf]
        %v1726 = vld [vmem:[%s1688 + $0x94] sm:$0xf]
        %v1727 = vld [vmem:[%s1688 + $0x98] sm:$0xf]
        %v1728 = vld [vmem:[%s1688 + $0x9c] sm:$0xf]
        %v1729 = vld [vmem:[%s1688 + $0xa0] sm:$0xf]
        %v1730 = vld [vmem:[%s1688 + $0xa4] sm:$0xf]
        %v1731 = vld [vmem:[%s1688 + $0xa8] sm:$0xf]
        %v1732 = vld [vmem:[%s1688 + $0xac] sm:$0xf]
        %v1733 = vld [vmem:[%s1688 + $0xb0] sm:$0xf]
        %v1734 = vld [vmem:[%s1688 + $0xb4] sm:$0xf]
        %v1735 = vld [vmem:[%s1688 + $0xb8] sm:$0xf]
        %v1736 = vld [vmem:[%s1688 + $0xbc] sm:$0xf]
        %s1737 = scalar_lea.vmem %s2, 5
        %v1738 = vld [vmem:[%s1737] sm:$0x1]
        %v1740 = vlaneseq
        %v1741 = vshrl.u32 %v1740, 7
        %v1742 = vsub.s32 0, %v1741
        %v1743 = vrot.slane %v1738, %v1742
        %v1793 = vunpack.c.l.b16 %v1689
        %v1794 = vunpack.c.l.b16 %v1690
        %v1795 = vunpack.c.l.b16 %v1691
        %v1796 = vunpack.c.l.b16 %v1692
        %v1797 = vunpack.c.l.b16 %v1693
        %v1798 = vunpack.c.l.b16 %v1694
        %v1799 = vunpack.c.l.b16 %v1695
        %v1800 = vunpack.c.l.b16 %v1696
        %v1801 = vunpack.c.l.b16 %v1697
        %v1802 = vunpack.c.l.b16 %v1698
        %v1803 = vunpack.c.l.b16 %v1699
        %v1804 = vunpack.c.l.b16 %v1700
        %v1805 = vunpack.c.l.b16 %v1701
        %v1806 = vunpack.c.l.b16 %v1702
        %v1807 = vunpack.c.l.b16 %v1703
        %v1808 = vunpack.c.l.b16 %v1704
        %v1809 = vunpack.c.l.b16 %v1705
        %v1810 = vunpack.c.l.b16 %v1706
        %v1811 = vunpack.c.l.b16 %v1707
        %v1812 = vunpack.c.l.b16 %v1708
        %v1813 = vunpack.c.l.b16 %v1709
        %v1814 = vunpack.c.l.b16 %v1710
        %v1815 = vunpack.c.l.b16 %v1711
        %v1816 = vunpack.c.l.b16 %v1712
        %v1817 = vunpack.c.l.b16 %v1713
        %v1818 = vunpack.c.l.b16 %v1714
        %v1819 = vunpack.c.l.b16 %v1715
        %v1820 = vunpack.c.l.b16 %v1716
        %v1821 = vunpack.c.l.b16 %v1717
        %v1822 = vunpack.c.l.b16 %v1718
        %v1823 = vunpack.c.l.b16 %v1719
        %v1824 = vunpack.c.l.b16 %v1720
        %v1825 = vunpack.c.l.b16 %v1721
        %v1826 = vunpack.c.l.b16 %v1722
        %v1827 = vunpack.c.l.b16 %v1723
        %v1828 = vunpack.c.l.b16 %v1724
        %v1829 = vunpack.c.l.b16 %v1725
        %v1830 = vunpack.c.l.b16 %v1726
        %v1831 = vunpack.c.l.b16 %v1727
        %v1832 = vunpack.c.l.b16 %v1728
        %v1833 = vunpack.c.l.b16 %v1729
        %v1834 = vunpack.c.l.b16 %v1730
        %v1835 = vunpack.c.l.b16 %v1731
        %v1836 = vunpack.c.l.b16 %v1732
        %v1837 = vunpack.c.l.b16 %v1733
        %v1838 = vunpack.c.l.b16 %v1734
        %v1839 = vunpack.c.l.b16 %v1735
        %v1840 = vunpack.c.l.b16 %v1736
        %v1841 = vpack.c.b16 %v1794, %v1793
        %v1842 = vpack.c.b16 %v1796, %v1795
        %v1843 = vpack.c.b16 %v1798, %v1797
        %v1844 = vpack.c.b16 %v1800, %v1799
        %v1845 = vpack.c.b16 %v1802, %v1801
        %v1846 = vpack.c.b16 %v1804, %v1803
        %v1847 = vpack.c.b16 %v1806, %v1805
        %v1848 = vpack.c.b16 %v1808, %v1807
        %v1849 = vpack.c.b16 %v1810, %v1809
        %v1850 = vpack.c.b16 %v1812, %v1811
        %v1851 = vpack.c.b16 %v1814, %v1813
        %v1852 = vpack.c.b16 %v1816, %v1815
        %v1853 = vpack.c.b16 %v1818, %v1817
        %v1854 = vpack.c.b16 %v1820, %v1819
        %v1855 = vpack.c.b16 %v1822, %v1821
        %v1856 = vpack.c.b16 %v1824, %v1823
        %v1857 = vpack.c.b16 %v1826, %v1825
        %v1858 = vpack.c.b16 %v1828, %v1827
        %v1859 = vpack.c.b16 %v1830, %v1829
        %v1860 = vpack.c.b16 %v1832, %v1831
        %v1861 = vpack.c.b16 %v1834, %v1833
        %v1862 = vpack.c.b16 %v1836, %v1835
        %v1863 = vpack.c.b16 %v1838, %v1837
        %v1864 = vpack.c.b16 %v1840, %v1839
        %1889 = vmatprep.subr.bf16.mxu0 0
        %1890 = vmatpush1.bf16.msra.mxu0 %v1841
        %1891 = vmatprep.subr.bf16.mxu0 0
        %1892 = vmatpush1.bf16.msra.mxu0 %v1842
        %1893 = vmatprep.subr.bf16.mxu0 0
        %1894 = vmatpush1.bf16.msra.mxu0 %v1843
        %1895 = vmatprep.subr.bf16.mxu0 0
        %1896 = vmatpush1.bf16.msra.mxu0 %v1844
        %1897 = vmatprep.subr.bf16.mxu0 0
        %1898 = vmatpush1.bf16.msra.mxu0 %v1845
        %1899 = vmatprep.subr.bf16.mxu0 0
        %1900 = vmatpush1.bf16.msra.mxu0 %v1846
        %1901 = vmatprep.subr.bf16.mxu0 0
        %1902 = vmatpush1.bf16.msra.mxu0 %v1847
        %1903 = vmatprep.subr.bf16.mxu0 0
        %1904 = vmatpush1.bf16.msra.mxu0 %v1848
        %1905 = vmatprep.subr.bf16.mxu0 0
        %1906 = vmatpush1.bf16.msra.mxu0 %v1849
        %1907 = vmatprep.subr.bf16.mxu0 0
        %1908 = vmatpush1.bf16.msra.mxu0 %v1850
        %1909 = vmatprep.subr.bf16.mxu0 0
        %1910 = vmatpush1.bf16.msra.mxu0 %v1851
        %1911 = vmatprep.subr.bf16.mxu0 0
        %1912 = vmatpush1.bf16.msra.mxu0 %v1852
        %1913 = vmatprep.subr.bf16.mxu0 0
        %1914 = vmatpush1.bf16.msra.mxu0 %v1853
        %1915 = vmatprep.subr.bf16.mxu0 0
        %1916 = vmatpush1.bf16.msra.mxu0 %v1854
        %1917 = vmatprep.subr.bf16.mxu0 0
        %1918 = vmatpush1.bf16.msra.mxu0 %v1855
        %1919 = vmatprep.subr.bf16.mxu0 0
        %1920 = vmatpush1.bf16.msra.mxu0 %v1856
        %1921 = vmatprep.mubr.bf16.mxu0 %v1686
        %1922 = vmatmul.mubr.bf16.gmra.mrb[0].mxu0 %v1685
        %v1923 = vpop.f32.mrb[0].mxu0
        %v1924 = vadd.f32 %v1743, %v1923
        %v1925 = vpop.f32.mrb[0].mxu0
        %v1926 = vpop.f32.mrb[0].mxu0
        %v1927 = vadd.f32 %v1743, %v1926
        %v1928 = vpop.f32.mrb[0].mxu0
        %1929 = vdwg.mxu0
        %1930 = vmatprep.subr.bf16.mxu0 0
        %1931 = vmatpush1.bf16.msra.mxu0 %v1857
        %1932 = vmatprep.subr.bf16.mxu0 0
        %1933 = vmatpush1.bf16.msra.mxu0 %v1858
        %1934 = vmatprep.subr.bf16.mxu0 0
        %1935 = vmatpush1.bf16.msra.mxu0 %v1859
        %1936 = vmatprep.subr.bf16.mxu0 0
        %1937 = vmatpush1.bf16.msra.mxu0 %v1860
        %1938 = vmatprep.subr.bf16.mxu0 0
        %1939 = vmatpush1.bf16.msra.mxu0 %v1861
        %1940 = vmatprep.subr.bf16.mxu0 0
        %1941 = vmatpush1.bf16.msra.mxu0 %v1862
        %1942 = vmatprep.subr.bf16.mxu0 0
        %1943 = vmatpush1.bf16.msra.mxu0 %v1863
        %1944 = vmatprep.subr.bf16.mxu0 0
        %1945 = vmatpush1.bf16.msra.mxu0 %v1864
        %1946 = vmatprep.subr.bf16.mxu0 0
        %1947 = vmatpush1.bf16.msra.mxu0 0
        %1948 = vmatprep.subr.bf16.mxu0 0
        %1949 = vmatpush1.bf16.msra.mxu0 0
        %1950 = vmatprep.subr.bf16.mxu0 0
        %1951 = vmatpush1.bf16.msra.mxu0 0
        %1952 = vmatprep.subr.bf16.mxu0 0
        %1953 = vmatpush1.bf16.msra.mxu0 0
        %1954 = vmatprep.subr.bf16.mxu0 0
        %1955 = vmatpush1.bf16.msra.mxu0 0
        %1956 = vmatprep.subr.bf16.mxu0 0
        %1957 = vmatpush1.bf16.msra.mxu0 0
        %1958 = vmatprep.subr.bf16.mxu0 0
        %1959 = vmatpush1.bf16.msra.mxu0 0
        %1960 = vmatprep.subr.bf16.mxu0 0
        %1961 = vmatpush1.bf16.msra.mxu0 0
        %1962 = vmatprep.mubr.bf16.mxu0 0
        %1963 = vmatmul.mubr.bf16.gmra.mrb[0].mxu0 %v1687
        %v1964 = vpop.f32.mrb[0].mxu0
        %v1965 = vadd.f32 %v1924, %v1964
        %v1966 = vpop.f32.mrb[0].mxu0
        %v1967 = vpop.f32.mrb[0].mxu0
        %v1968 = vadd.f32 %v1927, %v1967
        %v1969 = vpop.f32.mrb[0].mxu0
        %1970 = vdwg.mxu0
        %v1971 = vmax.f32 %v1965, 0.0
        %v1972 = vmax.f32 %v1968, 0.0
        %1973 = vst [vmem:[#allocation2 + $0x1] sm:$0xff] %v1971
        %1974 = vst [vmem:[#allocation2 + $0x9] sm:$0xff] %v1972
        %v1975 = vld [vmem:[#allocation2] sm:$0xff]
        %v1976 = vld [vmem:[#allocation2 + $0x8] sm:$0xff]
        %v1977 = vld [vmem:[#allocation2 + $0x1] sm:$0xff]
        %v1978 = vld [vmem:[#allocation2 + $0x9] sm:$0xff]
        %v1979 = vld [vmem:[#allocation2 + $0x2] sm:$0xff]
        %v1980 = vld [vmem:[#allocation2 + $0xa] sm:$0xff]
        %v1981 = vpack.c.bf16 %v1976, %v1975
        %v1982 = vpack.c.bf16 %v1978, %v1977
        %v1983 = vpack.c.bf16 %v1980, %v1979
        %s1984 = scalar_lea.vmem [#allocation4], 1152
        %v1985 = vld [vmem:[%s1984] sm:$0xf]
        %v1986 = vld [vmem:[%s1984 + $0x4] sm:$0xf]
        %v1987 = vld [vmem:[%s1984 + $0x8] sm:$0xf]
        %v1988 = vld [vmem:[%s1984 + $0xc] sm:$0xf]
        %v1989 = vld [vmem:[%s1984 + $0x10] sm:$0xf]
        %v1990 = vld [vmem:[%s1984 + $0x14] sm:$0xf]
        %v1991 = vld [vmem:[%s1984 + $0x18] sm:$0xf]
        %v1992 = vld [vmem:[%s1984 + $0x1c] sm:$0xf]
        %v1993 = vld [vmem:[%s1984 + $0x20] sm:$0xf]
        %v1994 = vld [vmem:[%s1984 + $0x24] sm:$0xf]
        %v1995 = vld [vmem:[%s1984 + $0x28] sm:$0xf]
        %v1996 = vld [vmem:[%s1984 + $0x2c] sm:$0xf]
        %v1997 = vld [vmem:[%s1984 + $0x30] sm:$0xf]
        %v1998 = vld [vmem:[%s1984 + $0x34] sm:$0xf]
        %v1999 = vld [vmem:[%s1984 + $0x38] sm:$0xf]
        %v2000 = vld [vmem:[%s1984 + $0x3c] sm:$0xf]
        %v2001 = vld [vmem:[%s1984 + $0x40] sm:$0xf]
        %v2002 = vld [vmem:[%s1984 + $0x44] sm:$0xf]
        %v2003 = vld [vmem:[%s1984 + $0x48] sm:$0xf]
        %v2004 = vld [vmem:[%s1984 + $0x4c] sm:$0xf]
        %v2005 = vld [vmem:[%s1984 + $0x50] sm:$0xf]
        %v2006 = vld [vmem:[%s1984 + $0x54] sm:$0xf]
        %v2007 = vld [vmem:[%s1984 + $0x58] sm:$0xf]
        %v2008 = vld [vmem:[%s1984 + $0x5c] sm:$0xf]
        %v2009 = vld [vmem:[%s1984 + $0x60] sm:$0xf]
        %v2010 = vld [vmem:[%s1984 + $0x64] sm:$0xf]
        %v2011 = vld [vmem:[%s1984 + $0x68] sm:$0xf]
        %v2012 = vld [vmem:[%s1984 + $0x6c] sm:$0xf]
        %v2013 = vld [vmem:[%s1984 + $0x70] sm:$0xf]
        %v2014 = vld [vmem:[%s1984 + $0x74] sm:$0xf]
        %v2015 = vld [vmem:[%s1984 + $0x78] sm:$0xf]
        %v2016 = vld [vmem:[%s1984 + $0x7c] sm:$0xf]
        %v2017 = vld [vmem:[%s1984 + $0x80] sm:$0xf]
        %v2018 = vld [vmem:[%s1984 + $0x84] sm:$0xf]
        %v2019 = vld [vmem:[%s1984 + $0x88] sm:$0xf]
        %v2020 = vld [vmem:[%s1984 + $0x8c] sm:$0xf]
        %v2021 = vld [vmem:[%s1984 + $0x90] sm:$0xf]
        %v2022 = vld [vmem:[%s1984 + $0x94] sm:$0xf]
        %v2023 = vld [vmem:[%s1984 + $0x98] sm:$0xf]
        %v2024 = vld [vmem:[%s1984 + $0x9c] sm:$0xf]
        %v2025 = vld [vmem:[%s1984 + $0xa0] sm:$0xf]
        %v2026 = vld [vmem:[%s1984 + $0xa4] sm:$0xf]
        %v2027 = vld [vmem:[%s1984 + $0xa8] sm:$0xf]
        %v2028 = vld [vmem:[%s1984 + $0xac] sm:$0xf]
        %v2029 = vld [vmem:[%s1984 + $0xb0] sm:$0xf]
        %v2030 = vld [vmem:[%s1984 + $0xb4] sm:$0xf]
        %v2031 = vld [vmem:[%s1984 + $0xb8] sm:$0xf]
        %v2032 = vld [vmem:[%s1984 + $0xbc] sm:$0xf]
        %s2033 = scalar_lea.vmem %s2, 6
        %v2034 = vld [vmem:[%s2033] sm:$0x1]
        %v2036 = vlaneseq
        %v2037 = vshrl.u32 %v2036, 7
        %v2038 = vsub.s32 0, %v2037
        %v2039 = vrot.slane %v2034, %v2038
        %v2089 = vunpack.c.l.b16 %v1985
        %v2090 = vunpack.c.l.b16 %v1986
        %v2091 = vunpack.c.l.b16 %v1987
        %v2092 = vunpack.c.l.b16 %v1988
        %v2093 = vunpack.c.l.b16 %v1989
        %v2094 = vunpack.c.l.b16 %v1990
        %v2095 = vunpack.c.l.b16 %v1991
        %v2096 = vunpack.c.l.b16 %v1992
        %v2097 = vunpack.c.l.b16 %v1993
        %v2098 = vunpack.c.l.b16 %v1994
        %v2099 = vunpack.c.l.b16 %v1995
        %v2100 = vunpack.c.l.b16 %v1996
        %v2101 = vunpack.c.l.b16 %v1997
        %v2102 = vunpack.c.l.b16 %v1998
        %v2103 = vunpack.c.l.b16 %v1999
        %v2104 = vunpack.c.l.b16 %v2000
        %v2105 = vunpack.c.l.b16 %v2001
        %v2106 = vunpack.c.l.b16 %v2002
        %v2107 = vunpack.c.l.b16 %v2003
        %v2108 = vunpack.c.l.b16 %v2004
        %v2109 = vunpack.c.l.b16 %v2005
        %v2110 = vunpack.c.l.b16 %v2006
        %v2111 = vunpack.c.l.b16 %v2007
        %v2112 = vunpack.c.l.b16 %v2008
        %v2113 = vunpack.c.l.b16 %v2009
        %v2114 = vunpack.c.l.b16 %v2010
        %v2115 = vunpack.c.l.b16 %v2011
        %v2116 = vunpack.c.l.b16 %v2012
        %v2117 = vunpack.c.l.b16 %v2013
        %v2118 = vunpack.c.l.b16 %v2014
        %v2119 = vunpack.c.l.b16 %v2015
        %v2120 = vunpack.c.l.b16 %v2016
        %v2121 = vunpack.c.l.b16 %v2017
        %v2122 = vunpack.c.l.b16 %v2018
        %v2123 = vunpack.c.l.b16 %v2019
        %v2124 = vunpack.c.l.b16 %v2020
        %v2125 = vunpack.c.l.b16 %v2021
        %v2126 = vunpack.c.l.b16 %v2022
        %v2127 = vunpack.c.l.b16 %v2023
        %v2128 = vunpack.c.l.b16 %v2024
        %v2129 = vunpack.c.l.b16 %v2025
        %v2130 = vunpack.c.l.b16 %v2026
        %v2131 = vunpack.c.l.b16 %v2027
        %v2132 = vunpack.c.l.b16 %v2028
        %v2133 = vunpack.c.l.b16 %v2029
        %v2134 = vunpack.c.l.b16 %v2030
        %v2135 = vunpack.c.l.b16 %v2031
        %v2136 = vunpack.c.l.b16 %v2032
        %v2137 = vpack.c.b16 %v2090, %v2089
        %v2138 = vpack.c.b16 %v2092, %v2091
        %v2139 = vpack.c.b16 %v2094, %v2093
        %v2140 = vpack.c.b16 %v2096, %v2095
        %v2141 = vpack.c.b16 %v2098, %v2097
        %v2142 = vpack.c.b16 %v2100, %v2099
        %v2143 = vpack.c.b16 %v2102, %v2101
        %v2144 = vpack.c.b16 %v2104, %v2103
        %v2145 = vpack.c.b16 %v2106, %v2105
        %v2146 = vpack.c.b16 %v2108, %v2107
        %v2147 = vpack.c.b16 %v2110, %v2109
        %v2148 = vpack.c.b16 %v2112, %v2111
        %v2149 = vpack.c.b16 %v2114, %v2113
        %v2150 = vpack.c.b16 %v2116, %v2115
        %v2151 = vpack.c.b16 %v2118, %v2117
        %v2152 = vpack.c.b16 %v2120, %v2119
        %v2153 = vpack.c.b16 %v2122, %v2121
        %v2154 = vpack.c.b16 %v2124, %v2123
        %v2155 = vpack.c.b16 %v2126, %v2125
        %v2156 = vpack.c.b16 %v2128, %v2127
        %v2157 = vpack.c.b16 %v2130, %v2129
        %v2158 = vpack.c.b16 %v2132, %v2131
        %v2159 = vpack.c.b16 %v2134, %v2133
        %v2160 = vpack.c.b16 %v2136, %v2135
        %2185 = vmatprep.subr.bf16.mxu0 0
        %2186 = vmatpush1.bf16.msra.mxu0 %v2137
        %2187 = vmatprep.subr.bf16.mxu0 0
        %2188 = vmatpush1.bf16.msra.mxu0 %v2138
        %2189 = vmatprep.subr.bf16.mxu0 0
        %2190 = vmatpush1.bf16.msra.mxu0 %v2139
        %2191 = vmatprep.subr.bf16.mxu0 0
        %2192 = vmatpush1.bf16.msra.mxu0 %v2140
        %2193 = vmatprep.subr.bf16.mxu0 0
        %2194 = vmatpush1.bf16.msra.mxu0 %v2141
        %2195 = vmatprep.subr.bf16.mxu0 0
        %2196 = vmatpush1.bf16.msra.mxu0 %v2142
        %2197 = vmatprep.subr.bf16.mxu0 0
        %2198 = vmatpush1.bf16.msra.mxu0 %v2143
        %2199 = vmatprep.subr.bf16.mxu0 0
        %2200 = vmatpush1.bf16.msra.mxu0 %v2144
        %2201 = vmatprep.subr.bf16.mxu0 0
        %2202 = vmatpush1.bf16.msra.mxu0 %v2145
        %2203 = vmatprep.subr.bf16.mxu0 0
        %2204 = vmatpush1.bf16.msra.mxu0 %v2146
        %2205 = vmatprep.subr.bf16.mxu0 0
        %2206 = vmatpush1.bf16.msra.mxu0 %v2147
        %2207 = vmatprep.subr.bf16.mxu0 0
        %2208 = vmatpush1.bf16.msra.mxu0 %v2148
        %2209 = vmatprep.subr.bf16.mxu0 0
        %2210 = vmatpush1.bf16.msra.mxu0 %v2149
        %2211 = vmatprep.subr.bf16.mxu0 0
        %2212 = vmatpush1.bf16.msra.mxu0 %v2150
        %2213 = vmatprep.subr.bf16.mxu0 0
        %2214 = vmatpush1.bf16.msra.mxu0 %v2151
        %2215 = vmatprep.subr.bf16.mxu0 0
        %2216 = vmatpush1.bf16.msra.mxu0 %v2152
        %2217 = vmatprep.mubr.bf16.mxu0 %v1982
        %2218 = vmatmul.mubr.bf16.gmra.mrb[0].mxu0 %v1981
        %v2219 = vpop.f32.mrb[0].mxu0
        %v2220 = vadd.f32 %v2039, %v2219
        %v2221 = vpop.f32.mrb[0].mxu0
        %v2222 = vpop.f32.mrb[0].mxu0
        %v2223 = vadd.f32 %v2039, %v2222
        %v2224 = vpop.f32.mrb[0].mxu0
        %2225 = vdwg.mxu0
        %2226 = vmatprep.subr.bf16.mxu0 0
        %2227 = vmatpush1.bf16.msra.mxu0 %v2153
        %2228 = vmatprep.subr.bf16.mxu0 0
        %2229 = vmatpush1.bf16.msra.mxu0 %v2154
        %2230 = vmatprep.subr.bf16.mxu0 0
        %2231 = vmatpush1.bf16.msra.mxu0 %v2155
        %2232 = vmatprep.subr.bf16.mxu0 0
        %2233 = vmatpush1.bf16.msra.mxu0 %v2156
        %2234 = vmatprep.subr.bf16.mxu0 0
        %2235 = vmatpush1.bf16.msra.mxu0 %v2157
        %2236 = vmatprep.subr.bf16.mxu0 0
        %2237 = vmatpush1.bf16.msra.mxu0 %v2158
        %2238 = vmatprep.subr.bf16.mxu0 0
        %2239 = vmatpush1.bf16.msra.mxu0 %v2159
        %2240 = vmatprep.subr.bf16.mxu0 0
        %2241 = vmatpush1.bf16.msra.mxu0 %v2160
        %2242 = vmatprep.subr.bf16.mxu0 0
        %2243 = vmatpush1.bf16.msra.mxu0 0
        %2244 = vmatprep.subr.bf16.mxu0 0
        %2245 = vmatpush1.bf16.msra.mxu0 0
        %2246 = vmatprep.subr.bf16.mxu0 0
        %2247 = vmatpush1.bf16.msra.mxu0 0
        %2248 = vmatprep.subr.bf16.mxu0 0
        %2249 = vmatpush1.bf16.msra.mxu0 0
        %2250 = vmatprep.subr.bf16.mxu0 0
        %2251 = vmatpush1.bf16.msra.mxu0 0
        %2252 = vmatprep.subr.bf16.mxu0 0
        %2253 = vmatpush1.bf16.msra.mxu0 0
        %2254 = vmatprep.subr.bf16.mxu0 0
        %2255 = vmatpush1.bf16.msra.mxu0 0
        %2256 = vmatprep.subr.bf16.mxu0 0
        %2257 = vmatpush1.bf16.msra.mxu0 0
        %2258 = vmatprep.mubr.bf16.mxu0 0
        %2259 = vmatmul.mubr.bf16.gmra.mrb[0].mxu0 %v1983
        %v2260 = vpop.f32.mrb[0].mxu0
        %v2261 = vadd.f32 %v2220, %v2260
        %v2262 = vpop.f32.mrb[0].mxu0
        %v2263 = vpop.f32.mrb[0].mxu0
        %v2264 = vadd.f32 %v2223, %v2263
        %v2265 = vpop.f32.mrb[0].mxu0
        %2266 = vdwg.mxu0
        %v2267 = vld [vmem:[#allocation3] sm:$0xff]
        %v2268 = vld [vmem:[#allocation3 + $0x8] sm:$0xff]
        %v2269 = vadd.f32 %v2261, %v2267
        %v2270 = vadd.f32 %v2264, %v2268
        %v2271 = vmax.f32 %v2269, 0.0
        %v2272 = vmax.f32 %v2270, 0.0
        %2273 = vst [vmem:[#allocation2 + $0x1] sm:$0xff] %v2271
        %2274 = vst [vmem:[#allocation2 + $0x9] sm:$0xff] %v2272
        %v2275 = vld [vmem:[#allocation2] sm:$0xff]
        %v2276 = vld [vmem:[#allocation2 + $0x8] sm:$0xff]
        %v2277 = vld [vmem:[#allocation2 + $0x1] sm:$0xff]
        %v2278 = vld [vmem:[#allocation2 + $0x9] sm:$0xff]
        %v2279 = vld [vmem:[#allocation2 + $0x2] sm:$0xff]
        %v2280 = vld [vmem:[#allocation2 + $0xa] sm:$0xff]
        %v2281 = vpack.c.bf16 %v2276, %v2275
        %v2282 = vpack.c.bf16 %v2278, %v2277
        %v2283 = vpack.c.bf16 %v2280, %v2279
        %s2284 = scalar_lea.vmem [#allocation4], 1344
        %v2285 = vld [vmem:[%s2284] sm:$0xf]
        %v2286 = vld [vmem:[%s2284 + $0x4] sm:$0xf]
        %v2287 = vld [vmem:[%s2284 + $0x8] sm:$0xf]
        %v2288 = vld [vmem:[%s2284 + $0xc] sm:$0xf]
        %v2289 = vld [vmem:[%s2284 + $0x10] sm:$0xf]
        %v2290 = vld [vmem:[%s2284 + $0x14] sm:$0xf]
        %v2291 = vld [vmem:[%s2284 + $0x18] sm:$0xf]
        %v2292 = vld [vmem:[%s2284 + $0x1c] sm:$0xf]
        %v2293 = vld [vmem:[%s2284 + $0x20] sm:$0xf]
        %v2294 = vld [vmem:[%s2284 + $0x24] sm:$0xf]
        %v2295 = vld [vmem:[%s2284 + $0x28] sm:$0xf]
        %v2296 = vld [vmem:[%s2284 + $0x2c] sm:$0xf]
        %v2297 = vld [vmem:[%s2284 + $0x30] sm:$0xf]
        %v2298 = vld [vmem:[%s2284 + $0x34] sm:$0xf]
        %v2299 = vld [vmem:[%s2284 + $0x38] sm:$0xf]
        %v2300 = vld [vmem:[%s2284 + $0x3c] sm:$0xf]
        %v2301 = vld [vmem:[%s2284 + $0x40] sm:$0xf]
        %v2302 = vld [vmem:[%s2284 + $0x44] sm:$0xf]
        %v2303 = vld [vmem:[%s2284 + $0x48] sm:$0xf]
        %v2304 = vld [vmem:[%s2284 + $0x4c] sm:$0xf]
        %v2305 = vld [vmem:[%s2284 + $0x50] sm:$0xf]
        %v2306 = vld [vmem:[%s2284 + $0x54] sm:$0xf]
        %v2307 = vld [vmem:[%s2284 + $0x58] sm:$0xf]
        %v2308 = vld [vmem:[%s2284 + $0x5c] sm:$0xf]
        %v2309 = vld [vmem:[%s2284 + $0x60] sm:$0xf]
        %v2310 = vld [vmem:[%s2284 + $0x64] sm:$0xf]
        %v2311 = vld [vmem:[%s2284 + $0x68] sm:$0xf]
        %v2312 = vld [vmem:[%s2284 + $0x6c] sm:$0xf]
        %v2313 = vld [vmem:[%s2284 + $0x70] sm:$0xf]
        %v2314 = vld [vmem:[%s2284 + $0x74] sm:$0xf]
        %v2315 = vld [vmem:[%s2284 + $0x78] sm:$0xf]
        %v2316 = vld [vmem:[%s2284 + $0x7c] sm:$0xf]
        %v2317 = vld [vmem:[%s2284 + $0x80] sm:$0xf]
        %v2318 = vld [vmem:[%s2284 + $0x84] sm:$0xf]
        %v2319 = vld [vmem:[%s2284 + $0x88] sm:$0xf]
        %v2320 = vld [vmem:[%s2284 + $0x8c] sm:$0xf]
        %v2321 = vld [vmem:[%s2284 + $0x90] sm:$0xf]
        %v2322 = vld [vmem:[%s2284 + $0x94] sm:$0xf]
        %v2323 = vld [vmem:[%s2284 + $0x98] sm:$0xf]
        %v2324 = vld [vmem:[%s2284 + $0x9c] sm:$0xf]
        %v2325 = vld [vmem:[%s2284 + $0xa0] sm:$0xf]
        %v2326 = vld [vmem:[%s2284 + $0xa4] sm:$0xf]
        %v2327 = vld [vmem:[%s2284 + $0xa8] sm:$0xf]
        %v2328 = vld [vmem:[%s2284 + $0xac] sm:$0xf]
        %v2329 = vld [vmem:[%s2284 + $0xb0] sm:$0xf]
        %v2330 = vld [vmem:[%s2284 + $0xb4] sm:$0xf]
        %v2331 = vld [vmem:[%s2284 + $0xb8] sm:$0xf]
        %v2332 = vld [vmem:[%s2284 + $0xbc] sm:$0xf]
        %s2333 = scalar_lea.vmem %s2, 7
        %v2334 = vld [vmem:[%s2333] sm:$0x1]
        %v2336 = vlaneseq
        %v2337 = vshrl.u32 %v2336, 7
        %v2338 = vsub.s32 0, %v2337
        %v2339 = vrot.slane %v2334, %v2338
        %v2389 = vunpack.c.l.b16 %v2285
        %v2390 = vunpack.c.l.b16 %v2286
        %v2391 = vunpack.c.l.b16 %v2287
        %v2392 = vunpack.c.l.b16 %v2288
        %v2393 = vunpack.c.l.b16 %v2289
        %v2394 = vunpack.c.l.b16 %v2290
        %v2395 = vunpack.c.l.b16 %v2291
        %v2396 = vunpack.c.l.b16 %v2292
        %v2397 = vunpack.c.l.b16 %v2293
        %v2398 = vunpack.c.l.b16 %v2294
        %v2399 = vunpack.c.l.b16 %v2295
        %v2400 = vunpack.c.l.b16 %v2296
        %v2401 = vunpack.c.l.b16 %v2297
        %v2402 = vunpack.c.l.b16 %v2298
        %v2403 = vunpack.c.l.b16 %v2299
        %v2404 = vunpack.c.l.b16 %v2300
        %v2405 = vunpack.c.l.b16 %v2301
        %v2406 = vunpack.c.l.b16 %v2302
        %v2407 = vunpack.c.l.b16 %v2303
        %v2408 = vunpack.c.l.b16 %v2304
        %v2409 = vunpack.c.l.b16 %v2305
        %v2410 = vunpack.c.l.b16 %v2306
        %v2411 = vunpack.c.l.b16 %v2307
        %v2412 = vunpack.c.l.b16 %v2308
        %v2413 = vunpack.c.l.b16 %v2309
        %v2414 = vunpack.c.l.b16 %v2310
        %v2415 = vunpack.c.l.b16 %v2311
        %v2416 = vunpack.c.l.b16 %v2312
        %v2417 = vunpack.c.l.b16 %v2313
        %v2418 = vunpack.c.l.b16 %v2314
        %v2419 = vunpack.c.l.b16 %v2315
        %v2420 = vunpack.c.l.b16 %v2316
        %v2421 = vunpack.c.l.b16 %v2317
        %v2422 = vunpack.c.l.b16 %v2318
        %v2423 = vunpack.c.l.b16 %v2319
        %v2424 = vunpack.c.l.b16 %v2320
        %v2425 = vunpack.c.l.b16 %v2321
        %v2426 = vunpack.c.l.b16 %v2322
        %v2427 = vunpack.c.l.b16 %v2323
        %v2428 = vunpack.c.l.b16 %v2324
        %v2429 = vunpack.c.l.b16 %v2325
        %v2430 = vunpack.c.l.b16 %v2326
        %v2431 = vunpack.c.l.b16 %v2327
        %v2432 = vunpack.c.l.b16 %v2328
        %v2433 = vunpack.c.l.b16 %v2329
        %v2434 = vunpack.c.l.b16 %v2330
        %v2435 = vunpack.c.l.b16 %v2331
        %v2436 = vunpack.c.l.b16 %v2332
        %v2437 = vpack.c.b16 %v2390, %v2389
        %v2438 = vpack.c.b16 %v2392, %v2391
        %v2439 = vpack.c.b16 %v2394, %v2393
        %v2440 = vpack.c.b16 %v2396, %v2395
        %v2441 = vpack.c.b16 %v2398, %v2397
        %v2442 = vpack.c.b16 %v2400, %v2399
        %v2443 = vpack.c.b16 %v2402, %v2401
        %v2444 = vpack.c.b16 %v2404, %v2403
        %v2445 = vpack.c.b16 %v2406, %v2405
        %v2446 = vpack.c.b16 %v2408, %v2407
        %v2447 = vpack.c.b16 %v2410, %v2409
        %v2448 = vpack.c.b16 %v2412, %v2411
        %v2449 = vpack.c.b16 %v2414, %v2413
        %v2450 = vpack.c.b16 %v2416, %v2415
        %v2451 = vpack.c.b16 %v2418, %v2417
        %v2452 = vpack.c.b16 %v2420, %v2419
        %v2453 = vpack.c.b16 %v2422, %v2421
        %v2454 = vpack.c.b16 %v2424, %v2423
        %v2455 = vpack.c.b16 %v2426, %v2425
        %v2456 = vpack.c.b16 %v2428, %v2427
        %v2457 = vpack.c.b16 %v2430, %v2429
        %v2458 = vpack.c.b16 %v2432, %v2431
        %v2459 = vpack.c.b16 %v2434, %v2433
        %v2460 = vpack.c.b16 %v2436, %v2435
        %2485 = vmatprep.subr.bf16.mxu0 0
        %2486 = vmatpush1.bf16.msra.mxu0 %v2437
        %2487 = vmatprep.subr.bf16.mxu0 0
        %2488 = vmatpush1.bf16.msra.mxu0 %v2438
        %2489 = vmatprep.subr.bf16.mxu0 0
        %2490 = vmatpush1.bf16.msra.mxu0 %v2439
        %2491 = vmatprep.subr.bf16.mxu0 0
        %2492 = vmatpush1.bf16.msra.mxu0 %v2440
        %2493 = vmatprep.subr.bf16.mxu0 0
        %2494 = vmatpush1.bf16.msra.mxu0 %v2441
        %2495 = vmatprep.subr.bf16.mxu0 0
        %2496 = vmatpush1.bf16.msra.mxu0 %v2442
        %2497 = vmatprep.subr.bf16.mxu0 0
        %2498 = vmatpush1.bf16.msra.mxu0 %v2443
        %2499 = vmatprep.subr.bf16.mxu0 0
        %2500 = vmatpush1.bf16.msra.mxu0 %v2444
        %2501 = vmatprep.subr.bf16.mxu0 0
        %2502 = vmatpush1.bf16.msra.mxu0 %v2445
        %2503 = vmatprep.subr.bf16.mxu0 0
        %2504 = vmatpush1.bf16.msra.mxu0 %v2446
        %2505 = vmatprep.subr.bf16.mxu0 0
        %2506 = vmatpush1.bf16.msra.mxu0 %v2447
        %2507 = vmatprep.subr.bf16.mxu0 0
        %2508 = vmatpush1.bf16.msra.mxu0 %v2448
        %2509 = vmatprep.subr.bf16.mxu0 0
        %2510 = vmatpush1.bf16.msra.mxu0 %v2449
        %2511 = vmatprep.subr.bf16.mxu0 0
        %2512 = vmatpush1.bf16.msra.mxu0 %v2450
        %2513 = vmatprep.subr.bf16.mxu0 0
        %2514 = vmatpush1.bf16.msra.mxu0 %v2451
        %2515 = vmatprep.subr.bf16.mxu0 0
        %2516 = vmatpush1.bf16.msra.mxu0 %v2452
        %2517 = vmatprep.mubr.bf16.mxu0 %v2282
        %2518 = vmatmul.mubr.bf16.gmra.mrb[0].mxu0 %v2281
        %v2519 = vpop.f32.mrb[0].mxu0
        %v2520 = vadd.f32 %v2339, %v2519
        %v2521 = vpop.f32.mrb[0].mxu0
        %v2522 = vpop.f32.mrb[0].mxu0
        %v2523 = vadd.f32 %v2339, %v2522
        %v2524 = vpop.f32.mrb[0].mxu0
        %2525 = vdwg.mxu0
        %2526 = vmatprep.subr.bf16.mxu0 0
        %2527 = vmatpush1.bf16.msra.mxu0 %v2453
        %2528 = vmatprep.subr.bf16.mxu0 0
        %2529 = vmatpush1.bf16.msra.mxu0 %v2454
        %2530 = vmatprep.subr.bf16.mxu0 0
        %2531 = vmatpush1.bf16.msra.mxu0 %v2455
        %2532 = vmatprep.subr.bf16.mxu0 0
        %2533 = vmatpush1.bf16.msra.mxu0 %v2456
        %2534 = vmatprep.subr.bf16.mxu0 0
        %2535 = vmatpush1.bf16.msra.mxu0 %v2457
        %2536 = vmatprep.subr.bf16.mxu0 0
        %2537 = vmatpush1.bf16.msra.mxu0 %v2458
        %2538 = vmatprep.subr.bf16.mxu0 0
        %2539 = vmatpush1.bf16.msra.mxu0 %v2459
        %2540 = vmatprep.subr.bf16.mxu0 0
        %2541 = vmatpush1.bf16.msra.mxu0 %v2460
        %2542 = vmatprep.subr.bf16.mxu0 0
        %2543 = vmatpush1.bf16.msra.mxu0 0
        %2544 = vmatprep.subr.bf16.mxu0 0
        %2545 = vmatpush1.bf16.msra.mxu0 0
        %2546 = vmatprep.subr.bf16.mxu0 0
        %2547 = vmatpush1.bf16.msra.mxu0 0
        %2548 = vmatprep.subr.bf16.mxu0 0
        %2549 = vmatpush1.bf16.msra.mxu0 0
        %2550 = vmatprep.subr.bf16.mxu0 0
        %2551 = vmatpush1.bf16.msra.mxu0 0
        %2552 = vmatprep.subr.bf16.mxu0 0
        %2553 = vmatpush1.bf16.msra.mxu0 0
        %2554 = vmatprep.subr.bf16.mxu0 0
        %2555 = vmatpush1.bf16.msra.mxu0 0
        %2556 = vmatprep.subr.bf16.mxu0 0
        %2557 = vmatpush1.bf16.msra.mxu0 0
        %2558 = vmatprep.mubr.bf16.mxu0 0
        %2559 = vmatmul.mubr.bf16.gmra.mrb[0].mxu0 %v2283
        %v2560 = vpop.f32.mrb[0].mxu0
        %v2561 = vadd.f32 %v2520, %v2560
        %v2562 = vpop.f32.mrb[0].mxu0
        %v2563 = vpop.f32.mrb[0].mxu0
        %v2564 = vadd.f32 %v2523, %v2563
        %v2565 = vpop.f32.mrb[0].mxu0
        %2566 = vdwg.mxu0
        %v2567 = vmax.f32 %v2561, 0.0
        %v2568 = vmax.f32 %v2564, 0.0
        %2569 = vst [vmem:[%s185] sm:$0xff] %v2567
        %2570 = vst [vmem:[%s185 + $0x8] sm:$0xff] %v2568
        %p2571 = scmp.lt.s32.totalorder %s15, 1
        %s2572 = scalar_select %p2571, %s15, 1
        %s2573 = smul.addr %s2572, 2
        %s2574 = smul.addr %s2573, 8
        %s2575 = scalar_lea.vmem %s3, %s2574
        // Predicated region
        $region37: #{residual_conv_forward.1} parent=31 // pred_check
          %p2576 = pneg %p101
        $region38: #{residual_conv_forward.1} parent=31 // pred_check_branch
          %2578 = sbr.rel (%p2576) target = $region40
        $region39: #{residual_conv_forward.1} parent=31 // pred_region
          _
        $region40: #{residual_conv_forward.1} parent=31 // pred_fallthru
          _
      $region32: #{residual_conv_forward.1} parent=5 // pred_fallthru
        _
      %p2579 = scmp.le.s32.totalorder 2, %s10
      // Predicated region
      $region41: #{residual_conv_forward.1} parent=5 // pred_check
        %p2580 = pneg %p2579
      $region42: #{residual_conv_forward.1} parent=5 // pred_check_branch
        %2582 = sbr.rel (%p2580) target = $region44
      $region43: #{residual_conv_forward.1} parent=5 // pred_region
        %s2583 = ssub.s32 %s10, 2
        // Predicated region
        $region45: #{residual_conv_forward.1} parent=43 // pred_check
          %p2584 = pneg %p107
        $region46: #{residual_conv_forward.1} parent=43 // pred_check_branch
          %2586 = sbr.rel (%p2584) target = $region48
        $region47: #{residual_conv_forward.1} parent=43 // pred_region
          %p2587 = scmp.lt.s32.totalorder %s16, 1
          %s2588 = scalar_select %p2587, %s16, 1
          %s2589 = smul.addr %s2588, 2
          %s2590 = smul.addr %s2589, 8
          %s2591 = scalar_lea.vmem %s3, %s2590
        $region48: #{residual_conv_forward.1} parent=43 // pred_fallthru
          _
      $region44: #{residual_conv_forward.1} parent=5 // pred_fallthru
        _
    $region6: #{residual_conv_forward.1} parent=1 // loop_footer
      %s14 = sadd.s32 1, %s10
    $region7: #{residual_conv_forward.1} parent=1 // loop_footer_branch
      %9 = sbr.rel target = $region3
    $region8: #{residual_conv_forward.1} parent=1 // loop_exit
      _
    %2592 = vsyncpa [#allocation5], 1
    %s2593 = scalar_lea.sflag [#allocation5], 1
    %2594 = vsyncpa %s2593, 1

</llo_original>
